<compile_context>
chip_gen: v5e
topology: v5e:2x2
jax: 0.10.0
libtpu: 0.0.40
codegen_flags: <defaults>
</compile_context>

<pallas_src>
import functools

import jax
import jax.numpy as jnp
from jax.experimental import pallas as pl
from jax.experimental.pallas import tpu as pltpu


# ------------------------------ fused kernel ------------------------------- #

def _down_fused_kernel(xq_ref, w1_ref, s1_ref, b1_ref, w2_ref, s2_ref, b2_ref,
                       o_ref, pad1_ref, pad2_ref, *, Hp, Wp, Cin, Cmid, Cout):
    """MaxPool2d(2) -> (3x3 conv + BN + ReLU) x 2, all intermediates in VMEM.

    xq_ref   : (4, Hp, Wp, Cin)   the four 2x2-pool quadrants of one batch elem
    w1_ref   : (9, Cin, Cmid)     conv1 weights, one (Cin,Cmid) matrix per tap
    s1_ref   : (1, Cmid)          folded BN1 scale
    b1_ref   : (1, Cmid)          folded conv1-bias + BN1 shift
    w2_ref   : (9, Cmid, Cout)    conv2 weights
    s2_ref   : (1, Cout)          folded BN2 scale
    b2_ref   : (1, Cout)          folded conv2-bias + BN2 shift
    o_ref    : (1, Hp*Wp, Cout)   output block (natural matmul layout)
    pad1_ref : (Hp+2, Wp+2, Cin)  VMEM scratch: zero-padded pooled activation
    pad2_ref : (Hp+2, Wp+2, Cmid) VMEM scratch: zero-padded conv1 activation
    """
    # ---- 2x2 max pool (quadrants live on the leading dim of the block) ---- #
    pooled = jnp.maximum(jnp.maximum(xq_ref[0], xq_ref[1]),
                         jnp.maximum(xq_ref[2], xq_ref[3]))      # (Hp, Wp, Cin)

    # ---- in-kernel zero padding (padding=1) ------------------------------- #
    # Re-zeroed every grid step so the kernel stays correct when the
    # "parallel" batch axis is split across TensorCores (scratch is per-core).
    pad1_ref[...] = jnp.zeros_like(pad1_ref)
    pad1_ref[1:Hp + 1, 1:Wp + 1, :] = pooled

    def conv3x3_bn_relu(pad_ref, w_ref, s_ref, b_ref, cin, cout):
        # TODO(synk): for small cin, collapse the 9 taps into one
        # (Hp*Wp, 9*cin) x (9*cin, cout) im2col matmul (minor-dim concat).
        acc = jnp.zeros((Hp * Wp, cout), jnp.float32)  # small: stays in vregs
        for k in range(9):                             # static unroll, 9 taps
            ky, kx = k // 3, k % 3
            patch = pad_ref[ky:ky + Hp, kx:kx + Wp, :]           # (Hp, Wp, cin)
            acc = acc + jnp.dot(patch.reshape(Hp * Wp, cin), w_ref[k],
                                preferred_element_type=jnp.float32)
        y = acc * s_ref[...] + b_ref[...]    # folded conv bias + BN (eval mode)
        return jnp.maximum(y, 0.0)           # ReLU

    # ---- conv1 -> re-pad in VMEM -> conv2 ---------------------------------- #
    y1 = conv3x3_bn_relu(pad1_ref, w1_ref, s1_ref, b1_ref, Cin, Cmid)
    pad2_ref[...] = jnp.zeros_like(pad2_ref)
    pad2_ref[1:Hp + 1, 1:Wp + 1, :] = y1.reshape(Hp, Wp, Cmid)

    y2 = conv3x3_bn_relu(pad2_ref, w2_ref, s2_ref, b2_ref, Cmid, Cout)
    o_ref[0] = y2.astype(o_ref.dtype)


# ----------------------------- pallas wrapper ------------------------------ #

def down_pallas(xq, w1, s1, b1, w2, s2, b2, *, N, Hp, Wp, Cin, Cmid, Cout):
    """xq: (N*4, Hp, Wp, Cin) pool-quadrant layout -> (N, Hp*Wp, Cout)."""
    kern = functools.partial(_down_fused_kernel, Hp=Hp, Wp=Wp,
                             Cin=Cin, Cmid=Cmid, Cout=Cout)
    return pl.pallas_call(
        kern,
        out_shape=jax.ShapeDtypeStruct((N, Hp * Wp, Cout), xq.dtype),
        grid=(N,),
        in_specs=[
            pl.BlockSpec((4, Hp, Wp, Cin), lambda b: (b, 0, 0, 0)),  # quadrants
            pl.BlockSpec((9, Cin, Cmid), lambda b: (0, 0, 0)),       # w1
            pl.BlockSpec((1, Cmid), lambda b: (0, 0)),               # scale1
            pl.BlockSpec((1, Cmid), lambda b: (0, 0)),               # shift1
            pl.BlockSpec((9, Cmid, Cout), lambda b: (0, 0, 0)),      # w2
            pl.BlockSpec((1, Cout), lambda b: (0, 0)),               # scale2
            pl.BlockSpec((1, Cout), lambda b: (0, 0)),               # shift2
        ],
        out_specs=pl.BlockSpec((1, Hp * Wp, Cout), lambda b: (b, 0, 0)),
        scratch_shapes=[pltpu.VMEM((Hp + 2, Wp + 2, Cin), jnp.float32),
                        pltpu.VMEM((Hp + 2, Wp + 2, Cmid), jnp.float32)],
        compiler_params=pltpu.CompilerParams(
            dimension_semantics=("parallel",)),
    )(xq, w1, s1, b1, w2, s2, b2)


# ------------------------ parameters & forward ----------------------------- #

def init_down_params(key, cin, cout, eps=1e-5):
    """Deterministic synthetic parameters matching nn.Conv2d/BatchNorm2d shapes."""
    cmid = cout  # DoubleConv uses mid_channels = out_channels by default
    kc1, kc2 = jax.random.split(key, 2)

    def conv_init(k, ci, co):
        kw, kb = jax.random.split(k)
        bound = 1.0 / (ci * 9) ** 0.5                   # PyTorch default-ish
        w = jax.random.uniform(kw, (co, ci, 3, 3), jnp.float32, -bound, bound)
        b = jax.random.uniform(kb, (co,), jnp.float32, -bound, bound)
        return w, b

    w1, b1 = conv_init(kc1, cin, cmid)
    w2, b2 = conv_init(kc2, cmid, cout)

    def fold_bn(bias, co):
        gamma = jnp.ones((co,), jnp.float32)
        beta = jnp.zeros((co,), jnp.float32)
        mean = jnp.zeros((co,), jnp.float32)
        var = jnp.ones((co,), jnp.float32)
        scale = gamma / jnp.sqrt(var + eps)
        shift = (bias - mean) * scale + beta
        return scale.reshape(1, co), shift.reshape(1, co)

    s1, sh1 = fold_bn(b1, cmid)
    s2, sh2 = fold_bn(b2, cout)

    # (Cout, Cin, 3, 3) -> (3, 3, Cin, Cout) -> (9, Cin, Cout)
    w1k = jnp.transpose(w1, (2, 3, 1, 0)).reshape(9, cin, cmid)
    w2k = jnp.transpose(w2, (2, 3, 1, 0)).reshape(9, cmid, cout)
    return dict(w1=w1k, scale1=s1, shift1=sh1,
                w2=w2k, scale2=s2, shift2=sh2)


@jax.jit
def down_forward(x_nchw, params):
    """Down.forward: MaxPool2d(2) -> (Conv3x3+BN+ReLU) x 2.  NCHW in/out."""
    N, Cin, H, W = x_nchw.shape
    assert H % 2 == 0 and W % 2 == 0, "MaxPool2d(2) expects even H, W here"
    Hp, Wp = H // 2, W // 2
    Cmid = params["w1"].shape[-1]
    Cout = params["w2"].shape[-1]

    # NCHW -> (N*4, Hp, Wp, Cin): a single XLA transpose (replacing the old
    # NCHW->NHWC transpose) that also splits the 2x2 pool window onto leading
    # quadrant planes; the surrounding reshapes are free bitcasts.  No strided
    # sub-grid copies, no jnp.pad passes.
    xq = x_nchw.reshape(N, Cin, Hp, 2, Wp, 2)
    xq = jnp.transpose(xq, (0, 3, 5, 2, 4, 1))          # (N, 2, 2, Hp, Wp, Cin)
    xq = xq.reshape(N * 4, Hp, Wp, Cin)

    out = down_pallas(xq, params["w1"], params["scale1"], params["shift1"],
                      params["w2"], params["scale2"], params["shift2"],
                      N=N, Hp=Hp, Wp=Wp, Cin=Cin, Cmid=Cmid, Cout=Cout)

    out = out.reshape(N, Hp, Wp, Cout)                  # free bitcast
    return jnp.transpose(out, (0, 3, 1, 2))             # NHWC -> NCHW


# ---------------------------- pure-JAX reference ---------------------------- #

def down_reference(x_nchw, params):
    x = jnp.transpose(x_nchw, (0, 2, 3, 1))
    N, H, W, C = x.shape
    Hp, Wp = H // 2, W // 2
    p = x.reshape(N, Hp, 2, Wp, 2, C).max(axis=(2, 4))

    def conv(h, w9, scale, shift):
        cin, cout = w9.shape[1], w9.shape[2]
        w = w9.reshape(3, 3, cin, cout)
        y = jax.lax.conv_general_dilated(
            h, w, window_strides=(1, 1), padding=((1, 1), (1, 1)),
            dimension_numbers=("NHWC", "HWIO", "NHWC"))
        y = y * scale.reshape(1, 1, 1, cout) + shift.reshape(1, 1, 1, cout)
        return jnp.maximum(y, 0.0)

    h = conv(p, params["w1"], params["scale1"], params["shift1"])
    o = conv(h, params["w2"], params["scale2"], params["shift2"])
    return jnp.transpose(o, (0, 3, 1, 2))


# ----------------------------------- main ----------------------------------- #

if __name__ == "__main__":
    key = jax.random.PRNGKey(0)
    kx, kp = jax.random.split(key)

    N, in_channels, out_channels, H, W = 2, 4, 8, 16, 16
    x = jax.random.normal(kx, (N, in_channels, H, W), dtype=jnp.float32)
    params = init_down_params(kp, in_channels, out_channels)

    y = down_forward(x, params)
    jax.block_until_ready(y)

    assert y.shape == (N, out_channels, H // 2, W // 2), y.shape
    assert bool(jnp.all(y >= 0.0))                      # ReLU output

    y_ref = down_reference(x, params)
    assert bool(jnp.allclose(y, y_ref, atol=1e-4, rtol=1e-4)), \
        float(jnp.max(jnp.abs(y - y_ref)))

    print("KERNEL_OK")
</pallas_src>

<mosaic_0001>
module attributes {stable_mosaic.version = 11 : i64} {
  func.func @_down_fused_kernel(%arg0: i32, %arg1: memref<4x8x8x4xf32, #tpu.memory_space<vmem>>, %arg2: memref<9x4x8xf32, #tpu.memory_space<vmem>>, %arg3: memref<1x8xf32, #tpu.memory_space<vmem>>, %arg4: memref<1x8xf32, #tpu.memory_space<vmem>>, %arg5: memref<9x8x8xf32, #tpu.memory_space<vmem>>, %arg6: memref<1x8xf32, #tpu.memory_space<vmem>>, %arg7: memref<1x8xf32, #tpu.memory_space<vmem>>, %arg8: memref<1x64x8xf32, #tpu.memory_space<vmem>>, %arg9: memref<10x10x4xf32, #tpu.memory_space<vmem>>, %arg10: memref<10x10x8xf32, #tpu.memory_space<vmem>>) attributes {dimension_semantics = [#tpu.dimension_semantics<parallel>], iteration_bounds = array<i64: 2>, scalar_prefetch = 0 : i64, scratch_operands = 2 : i64, tpu.core_type = #tpu.core_type<tc>, window_params = [{transform_indices = @transform_0, window_bounds = array<i64: 4, 8, 8, 4>}, {pipeline_mode = #tpu.pipeline_mode<synchronous>, transform_indices = @transform_1, window_bounds = array<i64: 9, 4, 8>}, {pipeline_mode = #tpu.pipeline_mode<synchronous>, transform_indices = @transform_2, window_bounds = array<i64: 1, 8>}, {pipeline_mode = #tpu.pipeline_mode<synchronous>, transform_indices = @transform_3, window_bounds = array<i64: 1, 8>}, {pipeline_mode = #tpu.pipeline_mode<synchronous>, transform_indices = @transform_4, window_bounds = array<i64: 9, 8, 8>}, {pipeline_mode = #tpu.pipeline_mode<synchronous>, transform_indices = @transform_5, window_bounds = array<i64: 1, 8>}, {pipeline_mode = #tpu.pipeline_mode<synchronous>, transform_indices = @transform_6, window_bounds = array<i64: 1, 8>}, {transform_indices = @transform_7, window_bounds = array<i64: 1, 64, 8>}]} {
    %c0 = arith.constant 0 : index
    %c0_0 = arith.constant 0 : index
    %c0_1 = arith.constant 0 : index
    %c0_2 = arith.constant 0 : index
    %0 = vector.load %arg1[%c0, %c0_0, %c0_1, %c0_2] : memref<4x8x8x4xf32, #tpu.memory_space<vmem>>, vector<1x8x8x4xf32>
    %1 = vector.shape_cast %0 : vector<1x8x8x4xf32> to vector<8x8x4xf32>
    %c1 = arith.constant 1 : index
    %c0_3 = arith.constant 0 : index
    %c0_4 = arith.constant 0 : index
    %c0_5 = arith.constant 0 : index
    %2 = vector.load %arg1[%c1, %c0_3, %c0_4, %c0_5] : memref<4x8x8x4xf32, #tpu.memory_space<vmem>>, vector<1x8x8x4xf32>
    %3 = vector.shape_cast %2 : vector<1x8x8x4xf32> to vector<8x8x4xf32>
    %4 = arith.maximumf %1, %3 : vector<8x8x4xf32>
    %c2 = arith.constant 2 : index
    %c0_6 = arith.constant 0 : index
    %c0_7 = arith.constant 0 : index
    %c0_8 = arith.constant 0 : index
    %5 = vector.load %arg1[%c2, %c0_6, %c0_7, %c0_8] : memref<4x8x8x4xf32, #tpu.memory_space<vmem>>, vector<1x8x8x4xf32>
    %6 = vector.shape_cast %5 : vector<1x8x8x4xf32> to vector<8x8x4xf32>
    %c3 = arith.constant 3 : index
    %c0_9 = arith.constant 0 : index
    %c0_10 = arith.constant 0 : index
    %c0_11 = arith.constant 0 : index
    %7 = vector.load %arg1[%c3, %c0_9, %c0_10, %c0_11] : memref<4x8x8x4xf32, #tpu.memory_space<vmem>>, vector<1x8x8x4xf32>
    %8 = vector.shape_cast %7 : vector<1x8x8x4xf32> to vector<8x8x4xf32>
    %9 = arith.maximumf %6, %8 : vector<8x8x4xf32>
    %10 = arith.maximumf %4, %9 : vector<8x8x4xf32>
    %cst = arith.constant 0.000000e+00 : f32
    %11 = vector.broadcast %cst : f32 to vector<10x10x4xf32>
    %c0_12 = arith.constant 0 : index
    %c0_13 = arith.constant 0 : index
    %c0_14 = arith.constant 0 : index
    %12 = vector.load %arg9[%c0_12, %c0_13, %c0_14] : memref<10x10x4xf32, #tpu.memory_space<vmem>>, vector<10x10x4xf32>
    tpu.vector_store %arg9[%c0_12, %c0_13, %c0_14], %11 {strides = array<i32>} : memref<10x10x4xf32, #tpu.memory_space<vmem>>, vector<10x10x4xf32>,
    %c1_15 = arith.constant 1 : index
    %c1_16 = arith.constant 1 : index
    %c0_17 = arith.constant 0 : index
    %13 = vector.load %arg9[%c1_15, %c1_16, %c0_17] : memref<10x10x4xf32, #tpu.memory_space<vmem>>, vector<8x8x4xf32>
    tpu.vector_store %arg9[%c1_15, %c1_16, %c0_17], %10 {strides = array<i32>} : memref<10x10x4xf32, #tpu.memory_space<vmem>>, vector<8x8x4xf32>,
    %cst_18 = arith.constant 0.000000e+00 : f32
    %14 = vector.broadcast %cst_18 : f32 to vector<64x8xf32>
    %c0_19 = arith.constant 0 : index
    %c0_20 = arith.constant 0 : index
    %c0_21 = arith.constant 0 : index
    %15 = vector.load %arg9[%c0_19, %c0_20, %c0_21] : memref<10x10x4xf32, #tpu.memory_space<vmem>>, vector<8x8x4xf32>
    %16 = vector.shape_cast %15 : vector<8x8x4xf32> to vector<64x4xf32>
    %c0_22 = arith.constant 0 : index
    %c0_23 = arith.constant 0 : index
    %c0_24 = arith.constant 0 : index
    %17 = vector.load %arg2[%c0_22, %c0_23, %c0_24] : memref<9x4x8xf32, #tpu.memory_space<vmem>>, vector<1x4x8xf32>
    %18 = vector.shape_cast %17 : vector<1x4x8xf32> to vector<4x8xf32>
    %cst_25 = arith.constant dense<0.000000e+00> : vector<64x8xf32>
    %19 = tpu.matmul %16, %18, %cst_25 {dimension_numbers = #tpu.dot_dimension_numbers<[1], [0], [0], [1], [0, 0, 1, 1], [], []>} : vector<64x4xf32>, vector<4x8xf32>, vector<64x8xf32> -> vector<64x8xf32>
    %20 = arith.addf %14, %19 : vector<64x8xf32>
    %c0_26 = arith.constant 0 : index
    %c1_27 = arith.constant 1 : index
    %c0_28 = arith.constant 0 : index
    %21 = vector.load %arg9[%c0_26, %c1_27, %c0_28] : memref<10x10x4xf32, #tpu.memory_space<vmem>>, vector<8x8x4xf32>
    %22 = vector.shape_cast %21 : vector<8x8x4xf32> to vector<64x4xf32>
    %c1_29 = arith.constant 1 : index
    %c0_30 = arith.constant 0 : index
    %c0_31 = arith.constant 0 : index
    %23 = vector.load %arg2[%c1_29, %c0_30, %c0_31] : memref<9x4x8xf32, #tpu.memory_space<vmem>>, vector<1x4x8xf32>
    %24 = vector.shape_cast %23 : vector<1x4x8xf32> to vector<4x8xf32>
    %cst_32 = arith.constant dense<0.000000e+00> : vector<64x8xf32>
    %25 = tpu.matmul %22, %24, %cst_32 {dimension_numbers = #tpu.dot_dimension_numbers<[1], [0], [0], [1], [0, 0, 1, 1], [], []>} : vector<64x4xf32>, vector<4x8xf32>, vector<64x8xf32> -> vector<64x8xf32>
    %26 = arith.addf %20, %25 : vector<64x8xf32>
    %c0_33 = arith.constant 0 : index
    %c2_34 = arith.constant 2 : index
    %c0_35 = arith.constant 0 : index
    %27 = vector.load %arg9[%c0_33, %c2_34, %c0_35] : memref<10x10x4xf32, #tpu.memory_space<vmem>>, vector<8x8x4xf32>
    %28 = vector.shape_cast %27 : vector<8x8x4xf32> to vector<64x4xf32>
    %c2_36 = arith.constant 2 : index
    %c0_37 = arith.constant 0 : index
    %c0_38 = arith.constant 0 : index
    %29 = vector.load %arg2[%c2_36, %c0_37, %c0_38] : memref<9x4x8xf32, #tpu.memory_space<vmem>>, vector<1x4x8xf32>
    %30 = vector.shape_cast %29 : vector<1x4x8xf32> to vector<4x8xf32>
    %cst_39 = arith.constant dense<0.000000e+00> : vector<64x8xf32>
    %31 = tpu.matmul %28, %30, %cst_39 {dimension_numbers = #tpu.dot_dimension_numbers<[1], [0], [0], [1], [0, 0, 1, 1], [], []>} : vector<64x4xf32>, vector<4x8xf32>, vector<64x8xf32> -> vector<64x8xf32>
    %32 = arith.addf %26, %31 : vector<64x8xf32>
    %c1_40 = arith.constant 1 : index
    %c0_41 = arith.constant 0 : index
    %c0_42 = arith.constant 0 : index
    %33 = vector.load %arg9[%c1_40, %c0_41, %c0_42] : memref<10x10x4xf32, #tpu.memory_space<vmem>>, vector<8x8x4xf32>
    %34 = vector.shape_cast %33 : vector<8x8x4xf32> to vector<64x4xf32>
    %c3_43 = arith.constant 3 : index
    %c0_44 = arith.constant 0 : index
    %c0_45 = arith.constant 0 : index
    %35 = vector.load %arg2[%c3_43, %c0_44, %c0_45] : memref<9x4x8xf32, #tpu.memory_space<vmem>>, vector<1x4x8xf32>
    %36 = vector.shape_cast %35 : vector<1x4x8xf32> to vector<4x8xf32>
    %cst_46 = arith.constant dense<0.000000e+00> : vector<64x8xf32>
    %37 = tpu.matmul %34, %36, %cst_46 {dimension_numbers = #tpu.dot_dimension_numbers<[1], [0], [0], [1], [0, 0, 1, 1], [], []>} : vector<64x4xf32>, vector<4x8xf32>, vector<64x8xf32> -> vector<64x8xf32>
    %38 = arith.addf %32, %37 : vector<64x8xf32>
    %c1_47 = arith.constant 1 : index
    %c1_48 = arith.constant 1 : index
    %c0_49 = arith.constant 0 : index
    %39 = vector.load %arg9[%c1_47, %c1_48, %c0_49] : memref<10x10x4xf32, #tpu.memory_space<vmem>>, vector<8x8x4xf32>
    %40 = vector.shape_cast %39 : vector<8x8x4xf32> to vector<64x4xf32>
    %c4 = arith.constant 4 : index
    %c0_50 = arith.constant 0 : index
    %c0_51 = arith.constant 0 : index
    %41 = vector.load %arg2[%c4, %c0_50, %c0_51] : memref<9x4x8xf32, #tpu.memory_space<vmem>>, vector<1x4x8xf32>
    %42 = vector.shape_cast %41 : vector<1x4x8xf32> to vector<4x8xf32>
    %cst_52 = arith.constant dense<0.000000e+00> : vector<64x8xf32>
    %43 = tpu.matmul %40, %42, %cst_52 {dimension_numbers = #tpu.dot_dimension_numbers<[1], [0], [0], [1], [0, 0, 1, 1], [], []>} : vector<64x4xf32>, vector<4x8xf32>, vector<64x8xf32> -> vector<64x8xf32>
    %44 = arith.addf %38, %43 : vector<64x8xf32>
    %c1_53 = arith.constant 1 : index
    %c2_54 = arith.constant 2 : index
    %c0_55 = arith.constant 0 : index
    %45 = vector.load %arg9[%c1_53, %c2_54, %c0_55] : memref<10x10x4xf32, #tpu.memory_space<vmem>>, vector<8x8x4xf32>
    %46 = vector.shape_cast %45 : vector<8x8x4xf32> to vector<64x4xf32>
    %c5 = arith.constant 5 : index
    %c0_56 = arith.constant 0 : index
    %c0_57 = arith.constant 0 : index
    %47 = vector.load %arg2[%c5, %c0_56, %c0_57] : memref<9x4x8xf32, #tpu.memory_space<vmem>>, vector<1x4x8xf32>
    %48 = vector.shape_cast %47 : vector<1x4x8xf32> to vector<4x8xf32>
    %cst_58 = arith.constant dense<0.000000e+00> : vector<64x8xf32>
    %49 = tpu.matmul %46, %48, %cst_58 {dimension_numbers = #tpu.dot_dimension_numbers<[1], [0], [0], [1], [0, 0, 1, 1], [], []>} : vector<64x4xf32>, vector<4x8xf32>, vector<64x8xf32> -> vector<64x8xf32>
    %50 = arith.addf %44, %49 : vector<64x8xf32>
    %c2_59 = arith.constant 2 : index
    %c0_60 = arith.constant 0 : index
    %c0_61 = arith.constant 0 : index
    %51 = vector.load %arg9[%c2_59, %c0_60, %c0_61] : memref<10x10x4xf32, #tpu.memory_space<vmem>>, vector<8x8x4xf32>
    %52 = vector.shape_cast %51 : vector<8x8x4xf32> to vector<64x4xf32>
    %c6 = arith.constant 6 : index
    %c0_62 = arith.constant 0 : index
    %c0_63 = arith.constant 0 : index
    %53 = vector.load %arg2[%c6, %c0_62, %c0_63] : memref<9x4x8xf32, #tpu.memory_space<vmem>>, vector<1x4x8xf32>
    %54 = vector.shape_cast %53 : vector<1x4x8xf32> to vector<4x8xf32>
    %cst_64 = arith.constant dense<0.000000e+00> : vector<64x8xf32>
    %55 = tpu.matmul %52, %54, %cst_64 {dimension_numbers = #tpu.dot_dimension_numbers<[1], [0], [0], [1], [0, 0, 1, 1], [], []>} : vector<64x4xf32>, vector<4x8xf32>, vector<64x8xf32> -> vector<64x8xf32>
    %56 = arith.addf %50, %55 : vector<64x8xf32>
    %c2_65 = arith.constant 2 : index
    %c1_66 = arith.constant 1 : index
    %c0_67 = arith.constant 0 : index
    %57 = vector.load %arg9[%c2_65, %c1_66, %c0_67] : memref<10x10x4xf32, #tpu.memory_space<vmem>>, vector<8x8x4xf32>
    %58 = vector.shape_cast %57 : vector<8x8x4xf32> to vector<64x4xf32>
    %c7 = arith.constant 7 : index
    %c0_68 = arith.constant 0 : index
    %c0_69 = arith.constant 0 : index
    %59 = vector.load %arg2[%c7, %c0_68, %c0_69] : memref<9x4x8xf32, #tpu.memory_space<vmem>>, vector<1x4x8xf32>
    %60 = vector.shape_cast %59 : vector<1x4x8xf32> to vector<4x8xf32>
    %cst_70 = arith.constant dense<0.000000e+00> : vector<64x8xf32>
    %61 = tpu.matmul %58, %60, %cst_70 {dimension_numbers = #tpu.dot_dimension_numbers<[1], [0], [0], [1], [0, 0, 1, 1], [], []>} : vector<64x4xf32>, vector<4x8xf32>, vector<64x8xf32> -> vector<64x8xf32>
    %62 = arith.addf %56, %61 : vector<64x8xf32>
    %c2_71 = arith.constant 2 : index
    %c2_72 = arith.constant 2 : index
    %c0_73 = arith.constant 0 : index
    %63 = vector.load %arg9[%c2_71, %c2_72, %c0_73] : memref<10x10x4xf32, #tpu.memory_space<vmem>>, vector<8x8x4xf32>
    %64 = vector.shape_cast %63 : vector<8x8x4xf32> to vector<64x4xf32>
    %c8 = arith.constant 8 : index
    %c0_74 = arith.constant 0 : index
    %c0_75 = arith.constant 0 : index
    %65 = vector.load %arg2[%c8, %c0_74, %c0_75] : memref<9x4x8xf32, #tpu.memory_space<vmem>>, vector<1x4x8xf32>
    %66 = vector.shape_cast %65 : vector<1x4x8xf32> to vector<4x8xf32>
    %cst_76 = arith.constant dense<0.000000e+00> : vector<64x8xf32>
    %67 = tpu.matmul %64, %66, %cst_76 {dimension_numbers = #tpu.dot_dimension_numbers<[1], [0], [0], [1], [0, 0, 1, 1], [], []>} : vector<64x4xf32>, vector<4x8xf32>, vector<64x8xf32> -> vector<64x8xf32>
    %68 = arith.addf %62, %67 : vector<64x8xf32>
    %c0_77 = arith.constant 0 : index
    %c0_78 = arith.constant 0 : index
    %69 = vector.load %arg3[%c0_77, %c0_78] : memref<1x8xf32, #tpu.memory_space<vmem>>, vector<1x8xf32>
    %70 = vector.broadcast %69 : vector<1x8xf32> to vector<64x8xf32>
    %71 = arith.mulf %68, %70 : vector<64x8xf32>
    %c0_79 = arith.constant 0 : index
    %c0_80 = arith.constant 0 : index
    %72 = vector.load %arg4[%c0_79, %c0_80] : memref<1x8xf32, #tpu.memory_space<vmem>>, vector<1x8xf32>
    %73 = vector.broadcast %72 : vector<1x8xf32> to vector<64x8xf32>
    %74 = arith.addf %71, %73 : vector<64x8xf32>
    %cst_81 = arith.constant 0.000000e+00 : f32
    %75 = vector.broadcast %cst_81 : f32 to vector<64x8xf32>
    %76 = arith.maximumf %74, %75 : vector<64x8xf32>
    %cst_82 = arith.constant 0.000000e+00 : f32
    %77 = vector.broadcast %cst_82 : f32 to vector<10x10x8xf32>
    %c0_83 = arith.constant 0 : index
    %c0_84 = arith.constant 0 : index
    %c0_85 = arith.constant 0 : index
    %78 = vector.load %arg10[%c0_83, %c0_84, %c0_85] : memref<10x10x8xf32, #tpu.memory_space<vmem>>, vector<10x10x8xf32>
    tpu.vector_store %arg10[%c0_83, %c0_84, %c0_85], %77 {strides = array<i32>} : memref<10x10x8xf32, #tpu.memory_space<vmem>>, vector<10x10x8xf32>,
    %79 = vector.shape_cast %76 : vector<64x8xf32> to vector<8x8x8xf32>
    %c1_86 = arith.constant 1 : index
    %c1_87 = arith.constant 1 : index
    %c0_88 = arith.constant 0 : index
    %80 = vector.load %arg10[%c1_86, %c1_87, %c0_88] : memref<10x10x8xf32, #tpu.memory_space<vmem>>, vector<8x8x8xf32>
    tpu.vector_store %arg10[%c1_86, %c1_87, %c0_88], %79 {strides = array<i32>} : memref<10x10x8xf32, #tpu.memory_space<vmem>>, vector<8x8x8xf32>,
    %cst_89 = arith.constant 0.000000e+00 : f32
    %81 = vector.broadcast %cst_89 : f32 to vector<64x8xf32>
    %c0_90 = arith.constant 0 : index
    %c0_91 = arith.constant 0 : index
    %c0_92 = arith.constant 0 : index
    %82 = vector.load %arg10[%c0_90, %c0_91, %c0_92] : memref<10x10x8xf32, #tpu.memory_space<vmem>>, vector<8x8x8xf32>
    %83 = vector.shape_cast %82 : vector<8x8x8xf32> to vector<64x8xf32>
    %c0_93 = arith.constant 0 : index
    %c0_94 = arith.constant 0 : index
    %c0_95 = arith.constant 0 : index
    %84 = vector.load %arg5[%c0_93, %c0_94, %c0_95] : memref<9x8x8xf32, #tpu.memory_space<vmem>>, vector<1x8x8xf32>
    %85 = vector.shape_cast %84 : vector<1x8x8xf32> to vector<8x8xf32>
    %cst_96 = arith.constant dense<0.000000e+00> : vector<64x8xf32>
    %86 = tpu.matmul %83, %85, %cst_96 {dimension_numbers = #tpu.dot_dimension_numbers<[1], [0], [0], [1], [0, 0, 1, 1], [], []>} : vector<64x8xf32>, vector<8x8xf32>, vector<64x8xf32> -> vector<64x8xf32>
    %87 = arith.addf %81, %86 : vector<64x8xf32>
    %c0_97 = arith.constant 0 : index
    %c1_98 = arith.constant 1 : index
    %c0_99 = arith.constant 0 : index
    %88 = vector.load %arg10[%c0_97, %c1_98, %c0_99] : memref<10x10x8xf32, #tpu.memory_space<vmem>>, vector<8x8x8xf32>
    %89 = vector.shape_cast %88 : vector<8x8x8xf32> to vector<64x8xf32>
    %c1_100 = arith.constant 1 : index
    %c0_101 = arith.constant 0 : index
    %c0_102 = arith.constant 0 : index
    %90 = vector.load %arg5[%c1_100, %c0_101, %c0_102] : memref<9x8x8xf32, #tpu.memory_space<vmem>>, vector<1x8x8xf32>
    %91 = vector.shape_cast %90 : vector<1x8x8xf32> to vector<8x8xf32>
    %cst_103 = arith.constant dense<0.000000e+00> : vector<64x8xf32>
    %92 = tpu.matmul %89, %91, %cst_103 {dimension_numbers = #tpu.dot_dimension_numbers<[1], [0], [0], [1], [0, 0, 1, 1], [], []>} : vector<64x8xf32>, vector<8x8xf32>, vector<64x8xf32> -> vector<64x8xf32>
    %93 = arith.addf %87, %92 : vector<64x8xf32>
    %c0_104 = arith.constant 0 : index
    %c2_105 = arith.constant 2 : index
    %c0_106 = arith.constant 0 : index
    %94 = vector.load %arg10[%c0_104, %c2_105, %c0_106] : memref<10x10x8xf32, #tpu.memory_space<vmem>>, vector<8x8x8xf32>
    %95 = vector.shape_cast %94 : vector<8x8x8xf32> to vector<64x8xf32>
    %c2_107 = arith.constant 2 : index
    %c0_108 = arith.constant 0 : index
    %c0_109 = arith.constant 0 : index
    %96 = vector.load %arg5[%c2_107, %c0_108, %c0_109] : memref<9x8x8xf32, #tpu.memory_space<vmem>>, vector<1x8x8xf32>
    %97 = vector.shape_cast %96 : vector<1x8x8xf32> to vector<8x8xf32>
    %cst_110 = arith.constant dense<0.000000e+00> : vector<64x8xf32>
    %98 = tpu.matmul %95, %97, %cst_110 {dimension_numbers = #tpu.dot_dimension_numbers<[1], [0], [0], [1], [0, 0, 1, 1], [], []>} : vector<64x8xf32>, vector<8x8xf32>, vector<64x8xf32> -> vector<64x8xf32>
    %99 = arith.addf %93, %98 : vector<64x8xf32>
    %c1_111 = arith.constant 1 : index
    %c0_112 = arith.constant 0 : index
    %c0_113 = arith.constant 0 : index
    %100 = vector.load %arg10[%c1_111, %c0_112, %c0_113] : memref<10x10x8xf32, #tpu.memory_space<vmem>>, vector<8x8x8xf32>
    %101 = vector.shape_cast %100 : vector<8x8x8xf32> to vector<64x8xf32>
    %c3_114 = arith.constant 3 : index
    %c0_115 = arith.constant 0 : index
    %c0_116 = arith.constant 0 : index
    %102 = vector.load %arg5[%c3_114, %c0_115, %c0_116] : memref<9x8x8xf32, #tpu.memory_space<vmem>>, vector<1x8x8xf32>
    %103 = vector.shape_cast %102 : vector<1x8x8xf32> to vector<8x8xf32>
    %cst_117 = arith.constant dense<0.000000e+00> : vector<64x8xf32>
    %104 = tpu.matmul %101, %103, %cst_117 {dimension_numbers = #tpu.dot_dimension_numbers<[1], [0], [0], [1], [0, 0, 1, 1], [], []>} : vector<64x8xf32>, vector<8x8xf32>, vector<64x8xf32> -> vector<64x8xf32>
    %105 = arith.addf %99, %104 : vector<64x8xf32>
    %c1_118 = arith.constant 1 : index
    %c1_119 = arith.constant 1 : index
    %c0_120 = arith.constant 0 : index
    %106 = vector.load %arg10[%c1_118, %c1_119, %c0_120] : memref<10x10x8xf32, #tpu.memory_space<vmem>>, vector<8x8x8xf32>
    %107 = vector.shape_cast %106 : vector<8x8x8xf32> to vector<64x8xf32>
    %c4_121 = arith.constant 4 : index
    %c0_122 = arith.constant 0 : index
    %c0_123 = arith.constant 0 : index
    %108 = vector.load %arg5[%c4_121, %c0_122, %c0_123] : memref<9x8x8xf32, #tpu.memory_space<vmem>>, vector<1x8x8xf32>
    %109 = vector.shape_cast %108 : vector<1x8x8xf32> to vector<8x8xf32>
    %cst_124 = arith.constant dense<0.000000e+00> : vector<64x8xf32>
    %110 = tpu.matmul %107, %109, %cst_124 {dimension_numbers = #tpu.dot_dimension_numbers<[1], [0], [0], [1], [0, 0, 1, 1], [], []>} : vector<64x8xf32>, vector<8x8xf32>, vector<64x8xf32> -> vector<64x8xf32>
    %111 = arith.addf %105, %110 : vector<64x8xf32>
    %c1_125 = arith.constant 1 : index
    %c2_126 = arith.constant 2 : index
    %c0_127 = arith.constant 0 : index
    %112 = vector.load %arg10[%c1_125, %c2_126, %c0_127] : memref<10x10x8xf32, #tpu.memory_space<vmem>>, vector<8x8x8xf32>
    %113 = vector.shape_cast %112 : vector<8x8x8xf32> to vector<64x8xf32>
    %c5_128 = arith.constant 5 : index
    %c0_129 = arith.constant 0 : index
    %c0_130 = arith.constant 0 : index
    %114 = vector.load %arg5[%c5_128, %c0_129, %c0_130] : memref<9x8x8xf32, #tpu.memory_space<vmem>>, vector<1x8x8xf32>
    %115 = vector.shape_cast %114 : vector<1x8x8xf32> to vector<8x8xf32>
    %cst_131 = arith.constant dense<0.000000e+00> : vector<64x8xf32>
    %116 = tpu.matmul %113, %115, %cst_131 {dimension_numbers = #tpu.dot_dimension_numbers<[1], [0], [0], [1], [0, 0, 1, 1], [], []>} : vector<64x8xf32>, vector<8x8xf32>, vector<64x8xf32> -> vector<64x8xf32>
    %117 = arith.addf %111, %116 : vector<64x8xf32>
    %c2_132 = arith.constant 2 : index
    %c0_133 = arith.constant 0 : index
    %c0_134 = arith.constant 0 : index
    %118 = vector.load %arg10[%c2_132, %c0_133, %c0_134] : memref<10x10x8xf32, #tpu.memory_space<vmem>>, vector<8x8x8xf32>
    %119 = vector.shape_cast %118 : vector<8x8x8xf32> to vector<64x8xf32>
    %c6_135 = arith.constant 6 : index
    %c0_136 = arith.constant 0 : index
    %c0_137 = arith.constant 0 : index
    %120 = vector.load %arg5[%c6_135, %c0_136, %c0_137] : memref<9x8x8xf32, #tpu.memory_space<vmem>>, vector<1x8x8xf32>
    %121 = vector.shape_cast %120 : vector<1x8x8xf32> to vector<8x8xf32>
    %cst_138 = arith.constant dense<0.000000e+00> : vector<64x8xf32>
    %122 = tpu.matmul %119, %121, %cst_138 {dimension_numbers = #tpu.dot_dimension_numbers<[1], [0], [0], [1], [0, 0, 1, 1], [], []>} : vector<64x8xf32>, vector<8x8xf32>, vector<64x8xf32> -> vector<64x8xf32>
    %123 = arith.addf %117, %122 : vector<64x8xf32>
    %c2_139 = arith.constant 2 : index
    %c1_140 = arith.constant 1 : index
    %c0_141 = arith.constant 0 : index
    %124 = vector.load %arg10[%c2_139, %c1_140, %c0_141] : memref<10x10x8xf32, #tpu.memory_space<vmem>>, vector<8x8x8xf32>
    %125 = vector.shape_cast %124 : vector<8x8x8xf32> to vector<64x8xf32>
    %c7_142 = arith.constant 7 : index
    %c0_143 = arith.constant 0 : index
    %c0_144 = arith.constant 0 : index
    %126 = vector.load %arg5[%c7_142, %c0_143, %c0_144] : memref<9x8x8xf32, #tpu.memory_space<vmem>>, vector<1x8x8xf32>
    %127 = vector.shape_cast %126 : vector<1x8x8xf32> to vector<8x8xf32>
    %cst_145 = arith.constant dense<0.000000e+00> : vector<64x8xf32>
    %128 = tpu.matmul %125, %127, %cst_145 {dimension_numbers = #tpu.dot_dimension_numbers<[1], [0], [0], [1], [0, 0, 1, 1], [], []>} : vector<64x8xf32>, vector<8x8xf32>, vector<64x8xf32> -> vector<64x8xf32>
    %129 = arith.addf %123, %128 : vector<64x8xf32>
    %c2_146 = arith.constant 2 : index
    %c2_147 = arith.constant 2 : index
    %c0_148 = arith.constant 0 : index
    %130 = vector.load %arg10[%c2_146, %c2_147, %c0_148] : memref<10x10x8xf32, #tpu.memory_space<vmem>>, vector<8x8x8xf32>
    %131 = vector.shape_cast %130 : vector<8x8x8xf32> to vector<64x8xf32>
    %c8_149 = arith.constant 8 : index
    %c0_150 = arith.constant 0 : index
    %c0_151 = arith.constant 0 : index
    %132 = vector.load %arg5[%c8_149, %c0_150, %c0_151] : memref<9x8x8xf32, #tpu.memory_space<vmem>>, vector<1x8x8xf32>
    %133 = vector.shape_cast %132 : vector<1x8x8xf32> to vector<8x8xf32>
    %cst_152 = arith.constant dense<0.000000e+00> : vector<64x8xf32>
    %134 = tpu.matmul %131, %133, %cst_152 {dimension_numbers = #tpu.dot_dimension_numbers<[1], [0], [0], [1], [0, 0, 1, 1], [], []>} : vector<64x8xf32>, vector<8x8xf32>, vector<64x8xf32> -> vector<64x8xf32>
    %135 = arith.addf %129, %134 : vector<64x8xf32>
    %c0_153 = arith.constant 0 : index
    %c0_154 = arith.constant 0 : index
    %136 = vector.load %arg6[%c0_153, %c0_154] : memref<1x8xf32, #tpu.memory_space<vmem>>, vector<1x8xf32>
    %137 = vector.broadcast %136 : vector<1x8xf32> to vector<64x8xf32>
    %138 = arith.mulf %135, %137 : vector<64x8xf32>
    %c0_155 = arith.constant 0 : index
    %c0_156 = arith.constant 0 : index
    %139 = vector.load %arg7[%c0_155, %c0_156] : memref<1x8xf32, #tpu.memory_space<vmem>>, vector<1x8xf32>
    %140 = vector.broadcast %139 : vector<1x8xf32> to vector<64x8xf32>
    %141 = arith.addf %138, %140 : vector<64x8xf32>
    %cst_157 = arith.constant 0.000000e+00 : f32
    %142 = vector.broadcast %cst_157 : f32 to vector<64x8xf32>
    %143 = arith.maximumf %141, %142 : vector<64x8xf32>
    %c0_158 = arith.constant 0 : index
    %c0_159 = arith.constant 0 : index
    %c0_160 = arith.constant 0 : index
    %144 = vector.load %arg8[%c0_158, %c0_159, %c0_160] : memref<1x64x8xf32, #tpu.memory_space<vmem>>, vector<1x64x8xf32>
    %145 = vector.shape_cast %144 : vector<1x64x8xf32> to vector<64x8xf32>
    %146 = vector.shape_cast %143 : vector<64x8xf32> to vector<1x64x8xf32>
    tpu.vector_store %arg8[%c0_158, %c0_159, %c0_160], %146 {strides = array<i32>} : memref<1x64x8xf32, #tpu.memory_space<vmem>>, vector<1x64x8xf32>,
    return
  }
  func.func @transform_0(%arg0: i32) -> (i32, i32, i32, i32) {
    %c0_i32 = arith.constant 0 : i32
    %c0_i32_0 = arith.constant 0 : i32
    %c0_i32_1 = arith.constant 0 : i32
    %c0_i32_2 = arith.constant 0 : i32
    return %arg0, %c0_i32, %c0_i32_0, %c0_i32_1 : i32, i32, i32, i32
  }
  func.func @transform_1(%arg0: i32) -> (i32, i32, i32) {
    %c0_i32 = arith.constant 0 : i32
    %c0_i32_0 = arith.constant 0 : i32
    %c0_i32_1 = arith.constant 0 : i32
    %c0_i32_2 = arith.constant 0 : i32
    return %c0_i32, %c0_i32_0, %c0_i32_1 : i32, i32, i32
  }
  func.func @transform_2(%arg0: i32) -> (i32, i32) {
    %c0_i32 = arith.constant 0 : i32
    %c0_i32_0 = arith.constant 0 : i32
    %c0_i32_1 = arith.constant 0 : i32
    return %c0_i32, %c0_i32_0 : i32, i32
  }
  func.func @transform_3(%arg0: i32) -> (i32, i32) {
    %c0_i32 = arith.constant 0 : i32
    %c0_i32_0 = arith.constant 0 : i32
    %c0_i32_1 = arith.constant 0 : i32
    return %c0_i32, %c0_i32_0 : i32, i32
  }
  func.func @transform_4(%arg0: i32) -> (i32, i32, i32) {
    %c0_i32 = arith.constant 0 : i32
    %c0_i32_0 = arith.constant 0 : i32
    %c0_i32_1 = arith.constant 0 : i32
    %c0_i32_2 = arith.constant 0 : i32
    return %c0_i32, %c0_i32_0, %c0_i32_1 : i32, i32, i32
  }
  func.func @transform_5(%arg0: i32) -> (i32, i32) {
    %c0_i32 = arith.constant 0 : i32
    %c0_i32_0 = arith.constant 0 : i32
    %c0_i32_1 = arith.constant 0 : i32
    return %c0_i32, %c0_i32_0 : i32, i32
  }
  func.func @transform_6(%arg0: i32) -> (i32, i32) {
    %c0_i32 = arith.constant 0 : i32
    %c0_i32_0 = arith.constant 0 : i32
    %c0_i32_1 = arith.constant 0 : i32
    return %c0_i32, %c0_i32_0 : i32, i32
  }
  func.func @transform_7(%arg0: i32) -> (i32, i32, i32) {
    %c0_i32 = arith.constant 0 : i32
    %c0_i32_0 = arith.constant 0 : i32
    %c0_i32_1 = arith.constant 0 : i32
    return %arg0, %c0_i32, %c0_i32_0 : i32, i32, i32
  }
}

</mosaic_0001>

<llo_original>
// kernel: down_forward.1
$region0: #{down_forward.1}
  #allocation0 [shape = 'u32[]', space=smem, size = 0x4, offset = 0x4, fixed_abs, tag = 'smem constant byte address 0x4 - core index']
  #allocation1 [shape = 'u32[72,128]{1,0:T(1,128)}', space=vmem, size = 0x9000, scoped, tag = 'internal scratch']
  #allocation2 [shape = 'f32[10,10,4]{2,1,0:T(8,128)}', space=vmem, size = 0x14000, scoped, tag = 'scratch operand']
  #allocation3 [shape = 'f32[10,10,8]{2,1,0:T(8,128)}', space=vmem, size = 0x14000, scoped, tag = 'scratch operand']
  %s0 = inlined_call_operand.vmem [shape: f32[8,8,8,4], index: 0, kind: input, shape index: {}]
  %s1 = inlined_call_operand.vmem [shape: f32[9,4,8], index: 1, kind: input, shape index: {}]
  %s2 = inlined_call_operand.vmem [shape: f32[1,8], index: 2, kind: input, shape index: {}]
  %s3 = inlined_call_operand.vmem [shape: f32[1,8], index: 3, kind: input, shape index: {}]
  %s4 = inlined_call_operand.vmem [shape: f32[9,8,8], index: 4, kind: input, shape index: {}]
  %s5 = inlined_call_operand.vmem [shape: f32[1,8], index: 5, kind: input, shape index: {}]
  %s6 = inlined_call_operand.vmem [shape: f32[1,8], index: 6, kind: input, shape index: {}]
  %s7 = inlined_call_operand.vmem [shape: f32[2,64,8], index: 7, kind: output, shape index: {}]
  %s8 = sld [smem:[#allocation0]]
  $region61: #{down_forward.1} parent=0
    _
  %s10 = ssub.s32 1, %s8
  %s11 = scalar_select 0, %s10, %s8
  loop: start=0, step=1, limit=4
  $region2: #{down_forward.1} parent=0 // loop_pre_header
    _
  $region3: #{down_forward.1} parent=0 // loop_header
    %s13 = sphi 0, %s17
    %p14 = scmp.ge.s32.totalorder %s13, 4
    %s23 = sphi 0, %s25
    %s26 = sphi 0, %s23
    %s27 = sphi 0, %s26
    %s43 = sphi 0, %s27
    %s47 = sphi 0, %s47
    %s49 = sphi 0, %s47
    %s50 = sphi 0, %s49
    %s64 = sphi 0, %s50
    %s68 = sphi 0, %s68
    %s70 = sphi 0, %s68
    %s71 = sphi 0, %s70
    %s85 = sphi 0, %s71
    %s89 = sphi 0, %s89
    %s91 = sphi 0, %s89
    %s92 = sphi 0, %s91
    %s106 = sphi 0, %s92
    %s110 = sphi 0, %s110
    %s112 = sphi 0, %s110
    %s113 = sphi 0, %s112
    %s127 = sphi 0, %s113
    %s131 = sphi 0, %s131
    %s133 = sphi 0, %s131
    %s134 = sphi 0, %s133
    %s148 = sphi 0, %s134
    %s152 = sphi 0, %s152
    %s154 = sphi 0, %s152
    %s155 = sphi 0, %s154
    %s169 = sphi 0, %s155
    %s175 = sphi 0, %s177
    %s178 = sphi 0, %s175
    %s179 = sphi 0, %s178
    %s195 = sphi 0, %s179
  $region4: #{down_forward.1} parent=0 // loop_header_branch
    %16 = sbr.rel (%p14) target = $region8
  $region5: #{down_forward.1} parent=0 // loop_body
    %s18 = ssub.s32 %s13, 1
    %s19 = ssub.s32 %s13, 2
    %s20 = sadd.s32 %s13, 1
    %s21 = ssub.s32 %s13, %s20
    %p22 = scmp.eq.s32.totalorder %s21, 0
    %s24 = sadd.s32 %s23, 1
    %s25 = scalar_select %p22, %s23, %s24
    %p28 = pneg %p22
    %p29 = scmp.eq.s32.totalorder %s13, 1
    %p30 = por %p28, %p29
    %p31 = scmp.ne.s32.totalorder %s23, %s26
    %p32 = scmp.eq.s32.totalorder %s13, 0
    %p33 = por %p31, %p32
    %p34 = scmp.ne.s32.totalorder %s23, %s26
    %p35 = scmp.eq.s32.totalorder %s18, 1
    %p36 = por %p34, %p35
    %p37 = scmp.ne.s32.totalorder %s26, %s27
    %p38 = scmp.eq.s32.totalorder %s18, 0
    %p39 = por %p37, %p38
    %p40 = scmp.ne.s32.totalorder %s26, %s27
    %p41 = scmp.eq.s32.totalorder %s19, 1
    %p42 = por %p40, %p41
    %p44 = scmp.ne.s32.totalorder %s27, %s43
    %p45 = scmp.eq.s32.totalorder %s19, 0
    %p46 = por %p44, %p45
    %s48 = sadd.s32 %s47, 1
    %p51 = scmp.eq.s32.totalorder %s13, 1
    %p52 = scmp.ne.s32.totalorder %s47, %s49
    %p53 = scmp.eq.s32.totalorder %s13, 0
    %p54 = por %p52, %p53
    %p55 = scmp.ne.s32.totalorder %s47, %s49
    %p56 = scmp.eq.s32.totalorder %s18, 1
    %p57 = por %p55, %p56
    %p58 = scmp.ne.s32.totalorder %s49, %s50
    %p59 = scmp.eq.s32.totalorder %s18, 0
    %p60 = por %p58, %p59
    %p61 = scmp.ne.s32.totalorder %s49, %s50
    %p62 = scmp.eq.s32.totalorder %s19, 1
    %p63 = por %p61, %p62
    %p65 = scmp.ne.s32.totalorder %s50, %s64
    %p66 = scmp.eq.s32.totalorder %s19, 0
    %p67 = por %p65, %p66
    %s69 = sadd.s32 %s68, 1
    %p72 = scmp.eq.s32.totalorder %s13, 1
    %p73 = scmp.ne.s32.totalorder %s68, %s70
    %p74 = scmp.eq.s32.totalorder %s13, 0
    %p75 = por %p73, %p74
    %p76 = scmp.ne.s32.totalorder %s68, %s70
    %p77 = scmp.eq.s32.totalorder %s18, 1
    %p78 = por %p76, %p77
    %p79 = scmp.ne.s32.totalorder %s70, %s71
    %p80 = scmp.eq.s32.totalorder %s18, 0
    %p81 = por %p79, %p80
    %p82 = scmp.ne.s32.totalorder %s70, %s71
    %p83 = scmp.eq.s32.totalorder %s19, 1
    %p84 = por %p82, %p83
    %p86 = scmp.ne.s32.totalorder %s71, %s85
    %p87 = scmp.eq.s32.totalorder %s19, 0
    %p88 = por %p86, %p87
    %s90 = sadd.s32 %s89, 1
    %p93 = scmp.eq.s32.totalorder %s13, 1
    %p94 = scmp.ne.s32.totalorder %s89, %s91
    %p95 = scmp.eq.s32.totalorder %s13, 0
    %p96 = por %p94, %p95
    %p97 = scmp.ne.s32.totalorder %s89, %s91
    %p98 = scmp.eq.s32.totalorder %s18, 1
    %p99 = por %p97, %p98
    %p100 = scmp.ne.s32.totalorder %s91, %s92
    %p101 = scmp.eq.s32.totalorder %s18, 0
    %p102 = por %p100, %p101
    %p103 = scmp.ne.s32.totalorder %s91, %s92
    %p104 = scmp.eq.s32.totalorder %s19, 1
    %p105 = por %p103, %p104
    %p107 = scmp.ne.s32.totalorder %s92, %s106
    %p108 = scmp.eq.s32.totalorder %s19, 0
    %p109 = por %p107, %p108
    %s111 = sadd.s32 %s110, 1
    %p114 = scmp.eq.s32.totalorder %s13, 1
    %p115 = scmp.ne.s32.totalorder %s110, %s112
    %p116 = scmp.eq.s32.totalorder %s13, 0
    %p117 = por %p115, %p116
    %p118 = scmp.ne.s32.totalorder %s110, %s112
    %p119 = scmp.eq.s32.totalorder %s18, 1
    %p120 = por %p118, %p119
    %p121 = scmp.ne.s32.totalorder %s112, %s113
    %p122 = scmp.eq.s32.totalorder %s18, 0
    %p123 = por %p121, %p122
    %p124 = scmp.ne.s32.totalorder %s112, %s113
    %p125 = scmp.eq.s32.totalorder %s19, 1
    %p126 = por %p124, %p125
    %p128 = scmp.ne.s32.totalorder %s113, %s127
    %p129 = scmp.eq.s32.totalorder %s19, 0
    %p130 = por %p128, %p129
    %s132 = sadd.s32 %s131, 1
    %p135 = scmp.eq.s32.totalorder %s13, 1
    %p136 = scmp.ne.s32.totalorder %s131, %s133
    %p137 = scmp.eq.s32.totalorder %s13, 0
    %p138 = por %p136, %p137
    %p139 = scmp.ne.s32.totalorder %s131, %s133
    %p140 = scmp.eq.s32.totalorder %s18, 1
    %p141 = por %p139, %p140
    %p142 = scmp.ne.s32.totalorder %s133, %s134
    %p143 = scmp.eq.s32.totalorder %s18, 0
    %p144 = por %p142, %p143
    %p145 = scmp.ne.s32.totalorder %s133, %s134
    %p146 = scmp.eq.s32.totalorder %s19, 1
    %p147 = por %p145, %p146
    %p149 = scmp.ne.s32.totalorder %s134, %s148
    %p150 = scmp.eq.s32.totalorder %s19, 0
    %p151 = por %p149, %p150
    %s153 = sadd.s32 %s152, 1
    %p156 = scmp.eq.s32.totalorder %s13, 1
    %p157 = scmp.ne.s32.totalorder %s152, %s154
    %p158 = scmp.eq.s32.totalorder %s13, 0
    %p159 = por %p157, %p158
    %p160 = scmp.ne.s32.totalorder %s152, %s154
    %p161 = scmp.eq.s32.totalorder %s18, 1
    %p162 = por %p160, %p161
    %p163 = scmp.ne.s32.totalorder %s154, %s155
    %p164 = scmp.eq.s32.totalorder %s18, 0
    %p165 = por %p163, %p164
    %p166 = scmp.ne.s32.totalorder %s154, %s155
    %p167 = scmp.eq.s32.totalorder %s19, 1
    %p168 = por %p166, %p167
    %p170 = scmp.ne.s32.totalorder %s155, %s169
    %p171 = scmp.eq.s32.totalorder %s19, 0
    %p172 = por %p170, %p171
    %s173 = ssub.s32 %s13, %s20
    %p174 = scmp.eq.s32.totalorder %s173, 0
    %s176 = sadd.s32 %s175, 1
    %s177 = scalar_select %p174, %s175, %s176
    %p180 = pneg %p174
    %p181 = scmp.eq.s32.totalorder %s13, 1
    %p182 = por %p180, %p181
    %p183 = scmp.ne.s32.totalorder %s175, %s178
    %p184 = scmp.eq.s32.totalorder %s13, 0
    %p185 = por %p183, %p184
    %p186 = scmp.ne.s32.totalorder %s175, %s178
    %p187 = scmp.eq.s32.totalorder %s18, 1
    %p188 = por %p186, %p187
    %p189 = scmp.ne.s32.totalorder %s178, %s179
    %p190 = scmp.eq.s32.totalorder %s18, 0
    %p191 = por %p189, %p190
    %p192 = scmp.ne.s32.totalorder %s178, %s179
    %p193 = scmp.eq.s32.totalorder %s19, 1
    %p194 = por %p192, %p193
    %p196 = scmp.ne.s32.totalorder %s179, %s195
    %p197 = scmp.eq.s32.totalorder %s19, 0
    %p198 = por %p196, %p197
    %p199 = scmp.le.s32.totalorder 1, %s13
    %p200 = scmp.lt.s32.totalorder %s13, 3
    %p201 = pnand %p199, %p200
    %p202 = pneg %p201
    // Predicated region
    $region9: #{down_forward.1} parent=5 // pred_check
      _
    $region10: #{down_forward.1} parent=5 // pred_check_branch
      %204 = sbr.rel (%p201) target = $region12
    $region11: #{down_forward.1} parent=5 // pred_region
      %s205 = ssub.s32 %s13, 1
      // Predicated region
      $region13: #{down_forward.1} parent=11 // pred_check
        %p206 = pneg %p60
      $region14: #{down_forward.1} parent=11 // pred_check_branch
        %208 = sbr.rel (%p206) target = $region16
      $region15: #{down_forward.1} parent=11 // pred_region
        _
      $region16: #{down_forward.1} parent=11 // pred_fallthru
        _
      // Predicated region
      $region17: #{down_forward.1} parent=11 // pred_check
        %p209 = pneg %p81
      $region18: #{down_forward.1} parent=11 // pred_check_branch
        %211 = sbr.rel (%p209) target = $region20
      $region19: #{down_forward.1} parent=11 // pred_region
        _
      $region20: #{down_forward.1} parent=11 // pred_fallthru
        _
      // Predicated region
      $region21: #{down_forward.1} parent=11 // pred_check
        %p212 = pneg %p102
      $region22: #{down_forward.1} parent=11 // pred_check_branch
        %214 = sbr.rel (%p212) target = $region24
      $region23: #{down_forward.1} parent=11 // pred_region
        _
      $region24: #{down_forward.1} parent=11 // pred_fallthru
        _
      // Predicated region
      $region25: #{down_forward.1} parent=11 // pred_check
        %p215 = pneg %p123
      $region26: #{down_forward.1} parent=11 // pred_check_branch
        %217 = sbr.rel (%p215) target = $region28
      $region27: #{down_forward.1} parent=11 // pred_region
        _
      $region28: #{down_forward.1} parent=11 // pred_fallthru
        _
      // Predicated region
      $region29: #{down_forward.1} parent=11 // pred_check
        %p218 = pneg %p144
      $region30: #{down_forward.1} parent=11 // pred_check_branch
        %220 = sbr.rel (%p218) target = $region32
      $region31: #{down_forward.1} parent=11 // pred_region
        _
      $region32: #{down_forward.1} parent=11 // pred_fallthru
        _
      // Predicated region
      $region33: #{down_forward.1} parent=11 // pred_check
        %p221 = pneg %p165
      $region34: #{down_forward.1} parent=11 // pred_check_branch
        %223 = sbr.rel (%p221) target = $region36
      $region35: #{down_forward.1} parent=11 // pred_region
        _
      $region36: #{down_forward.1} parent=11 // pred_fallthru
        _
    $region12: #{down_forward.1} parent=5 // pred_fallthru
      _
    %p224 = scmp.lt.s32.totalorder %s13, 2
    // Predicated region
    $region37: #{down_forward.1} parent=5 // pred_check
      %p225 = pneg %p224
    $region38: #{down_forward.1} parent=5 // pred_check_branch
      %227 = sbr.rel (%p225) target = $region40
    $region39: #{down_forward.1} parent=5 // pred_region
      // Predicated region
      $region41: #{down_forward.1} parent=39 // pred_check
        %p228 = pneg %p33
      $region42: #{down_forward.1} parent=39 // pred_check_branch
        %230 = sbr.rel (%p228) target = $region44
      $region43: #{down_forward.1} parent=39 // pred_region
        %s231 = smul.u32 4, %s13
        %p232 = scmp.lt.s32.totalorder %s231, 7
        %s233 = scalar_select %p232, %s231, 7
        %s234 = smul.addr %s233, 8
        %s235 = smul.addr %s234, 8
        %s236 = scalar_lea.vmem %s0, %s235
        %s237 = smul.u32 4, %s13
      $region44: #{down_forward.1} parent=39 // pred_fallthru
        _
    $region40: #{down_forward.1} parent=5 // pred_fallthru
      _
    %p238 = scmp.le.s32.totalorder 1, %s13
    %p239 = scmp.lt.s32.totalorder %s13, 3
    %p240 = pnand %p238, %p239
    %p241 = pneg %p240
    // Predicated region
    $region45: #{down_forward.1} parent=5 // pred_check
      _
    $region46: #{down_forward.1} parent=5 // pred_check_branch
      %243 = sbr.rel (%p240) target = $region48
    $region47: #{down_forward.1} parent=5 // pred_region
      %s244 = ssub.s32 %s13, 1
      %s245 = smul.u32 4, %s18
      %p246 = scmp.lt.s32.totalorder %s245, 7
      %s247 = scalar_select %p246, %s245, 7
      %s248 = smul.addr %s247, 8
      %s249 = smul.addr %s248, 8
      %s250 = scalar_lea.vmem %s0, %s249
      %p251 = pneg %p39
      %p252 = pneg %p36
      %p253 = pneg %p60
      %p254 = pneg %p57
      %p255 = pneg %p81
      %p256 = pneg %p78
      %p257 = pneg %p102
      %p258 = pneg %p99
      %p259 = pneg %p123
      %p260 = pneg %p120
      %p261 = pneg %p144
      %p262 = pneg %p141
      %p263 = pneg %p165
      %p264 = pneg %p162
      %p265 = pneg %p191
      %p266 = pneg %p188
      %p267 = scmp.lt.s32.totalorder %s18, 1
      %s268 = scalar_select %p267, %s18, 1
      %s269 = smul.addr %s268, 8
      %s270 = smul.addr %s269, 8
      %s271 = scalar_lea.vmem %s7, %s270
      %s272 = smul.u32 4, %s18
      %p273 = scmp.lt.s32.totalorder %s272, 7
      %s274 = scalar_select %p273, %s272, 7
      %s275 = smul.addr %s274, 8
      %s276 = smul.addr %s275, 8
      %s277 = scalar_lea.vmem %s0, %s276
      %s278 = smul.u32 4, %s18
      %p279 = scmp.lt.s32.totalorder %s18, 1
      %s280 = scalar_select %p279, %s18, 1
      %s281 = smul.addr %s280, 8
      %s282 = smul.addr %s281, 8
      %s283 = scalar_lea.vmem %s7, %s282
      %v284 = vld [vmem:[%s277] sm:$0xff]
      %v285 = vld [vmem:[%s277 + $0x8] sm:$0xff]
      %v286 = vld [vmem:[%s277 + $0x10] sm:$0xff]
      %v287 = vld [vmem:[%s277 + $0x18] sm:$0xff]
      %v288 = vld [vmem:[%s277 + $0x20] sm:$0xff]
      %v289 = vld [vmem:[%s277 + $0x28] sm:$0xff]
      %v290 = vld [vmem:[%s277 + $0x30] sm:$0xff]
      %v291 = vld [vmem:[%s277 + $0x38] sm:$0xff]
      %s292 = scalar_lea.vmem %s277, 64
      %v293 = vld [vmem:[%s292] sm:$0xff]
      %v294 = vld [vmem:[%s292 + $0x8] sm:$0xff]
      %v295 = vld [vmem:[%s292 + $0x10] sm:$0xff]
      %v296 = vld [vmem:[%s292 + $0x18] sm:$0xff]
      %v297 = vld [vmem:[%s292 + $0x20] sm:$0xff]
      %v298 = vld [vmem:[%s292 + $0x28] sm:$0xff]
      %v299 = vld [vmem:[%s292 + $0x30] sm:$0xff]
      %v300 = vld [vmem:[%s292 + $0x38] sm:$0xff]
      %v301 = vmax.f32 %v284, %v293
      %v302 = vmax.f32 %v285, %v294
      %v303 = vmax.f32 %v286, %v295
      %v304 = vmax.f32 %v287, %v296
      %v305 = vmax.f32 %v288, %v297
      %v306 = vmax.f32 %v289, %v298
      %v307 = vmax.f32 %v290, %v299
      %v308 = vmax.f32 %v291, %v300
      %s309 = scalar_lea.vmem %s277, 128
      %v310 = vld [vmem:[%s309] sm:$0xff]
      %v311 = vld [vmem:[%s309 + $0x8] sm:$0xff]
      %v312 = vld [vmem:[%s309 + $0x10] sm:$0xff]
      %v313 = vld [vmem:[%s309 + $0x18] sm:$0xff]
      %v314 = vld [vmem:[%s309 + $0x20] sm:$0xff]
      %v315 = vld [vmem:[%s309 + $0x28] sm:$0xff]
      %v316 = vld [vmem:[%s309 + $0x30] sm:$0xff]
      %v317 = vld [vmem:[%s309 + $0x38] sm:$0xff]
      %s318 = scalar_lea.vmem %s277, 192
      %v319 = vld [vmem:[%s318] sm:$0xff]
      %v320 = vld [vmem:[%s318 + $0x8] sm:$0xff]
      %v321 = vld [vmem:[%s318 + $0x10] sm:$0xff]
      %v322 = vld [vmem:[%s318 + $0x18] sm:$0xff]
      %v323 = vld [vmem:[%s318 + $0x20] sm:$0xff]
      %v324 = vld [vmem:[%s318 + $0x28] sm:$0xff]
      %v325 = vld [vmem:[%s318 + $0x30] sm:$0xff]
      %v326 = vld [vmem:[%s318 + $0x38] sm:$0xff]
      %v327 = vmax.f32 %v310, %v319
      %v328 = vmax.f32 %v311, %v320
      %v329 = vmax.f32 %v312, %v321
      %v330 = vmax.f32 %v313, %v322
      %v331 = vmax.f32 %v314, %v323
      %v332 = vmax.f32 %v315, %v324
      %v333 = vmax.f32 %v316, %v325
      %v334 = vmax.f32 %v317, %v326
      %v335 = vmax.f32 %v301, %v327
      %v336 = vmax.f32 %v302, %v328
      %v337 = vmax.f32 %v303, %v329
      %v338 = vmax.f32 %v304, %v330
      %v339 = vmax.f32 %v305, %v331
      %v340 = vmax.f32 %v306, %v332
      %v341 = vmax.f32 %v307, %v333
      %v342 = vmax.f32 %v308, %v334
      %vm343 = vcmask 31744
      %344 = vst.msk [vmem:[#allocation2] sm:$0xff] %vm343, 0.0
      %vm345 = vcmask 25600
      %346 = vst.msk [vmem:[#allocation2 + $0x8] sm:$0x3] %vm345, 0.0
      %347 = vst.msk [vmem:[#allocation2 + $0x10] sm:$0xff] %vm343, 0.0
      %348 = vst.msk [vmem:[#allocation2 + $0x18] sm:$0x3] %vm345, 0.0
      %349 = vst.msk [vmem:[#allocation2 + $0x20] sm:$0xff] %vm343, 0.0
      %350 = vst.msk [vmem:[#allocation2 + $0x28] sm:$0x3] %vm345, 0.0
      %351 = vst.msk [vmem:[#allocation2 + $0x30] sm:$0xff] %vm343, 0.0
      %352 = vst.msk [vmem:[#allocation2 + $0x38] sm:$0x3] %vm345, 0.0
      %353 = vst.msk [vmem:[#allocation2 + $0x40] sm:$0xff] %vm343, 0.0
      %354 = vst.msk [vmem:[#allocation2 + $0x48] sm:$0x3] %vm345, 0.0
      %355 = vst.msk [vmem:[#allocation2 + $0x50] sm:$0xff] %vm343, 0.0
      %356 = vst.msk [vmem:[#allocation2 + $0x58] sm:$0x3] %vm345, 0.0
      %357 = vst.msk [vmem:[#allocation2 + $0x60] sm:$0xff] %vm343, 0.0
      %358 = vst.msk [vmem:[#allocation2 + $0x68] sm:$0x3] %vm345, 0.0
      %359 = vst.msk [vmem:[#allocation2 + $0x70] sm:$0xff] %vm343, 0.0
      %360 = vst.msk [vmem:[#allocation2 + $0x78] sm:$0x3] %vm345, 0.0
      %361 = vst.msk [vmem:[#allocation2 + $0x80] sm:$0xff] %vm343, 0.0
      %362 = vst.msk [vmem:[#allocation2 + $0x88] sm:$0x3] %vm345, 0.0
      %363 = vst.msk [vmem:[#allocation2 + $0x90] sm:$0xff] %vm343, 0.0
      %364 = vst.msk [vmem:[#allocation2 + $0x98] sm:$0x3] %vm345, 0.0
      %s365 = scalar_lea.vmem [#allocation2], 16
      %366 = vst.msk [vmem:[%s365 + $0x1] sm:$0xff] %vm343, %v335
      %367 = vst.msk [vmem:[%s365 + $0x11] sm:$0xff] %vm343, %v336
      %368 = vst.msk [vmem:[%s365 + $0x21] sm:$0xff] %vm343, %v337
      %369 = vst.msk [vmem:[%s365 + $0x31] sm:$0xff] %vm343, %v338
      %370 = vst.msk [vmem:[%s365 + $0x41] sm:$0xff] %vm343, %v339
      %371 = vst.msk [vmem:[%s365 + $0x51] sm:$0xff] %vm343, %v340
      %372 = vst.msk [vmem:[%s365 + $0x61] sm:$0xff] %vm343, %v341
      %373 = vst.msk [vmem:[%s365 + $0x71] sm:$0xff] %vm343, %v342
      %v374 = vld [vmem:[#allocation2] sm:$0xff]
      %v375 = vld [vmem:[#allocation2 + $0x10] sm:$0xff]
      %v376 = vld [vmem:[#allocation2 + $0x20] sm:$0xff]
      %v377 = vld [vmem:[#allocation2 + $0x30] sm:$0xff]
      %v378 = vld [vmem:[#allocation2 + $0x40] sm:$0xff]
      %v379 = vld [vmem:[#allocation2 + $0x50] sm:$0xff]
      %v380 = vld [vmem:[#allocation2 + $0x60] sm:$0xff]
      %v381 = vld [vmem:[#allocation2 + $0x70] sm:$0xff]
      %v382 = vld [vmem:[%s1] sm:$0xf]
      %v383 = vld [vmem:[#allocation2 + $0x1] sm:$0xff]
      %v384 = vld [vmem:[#allocation2 + $0x11] sm:$0xff]
      %v385 = vld [vmem:[#allocation2 + $0x21] sm:$0xff]
      %v386 = vld [vmem:[#allocation2 + $0x31] sm:$0xff]
      %v387 = vld [vmem:[#allocation2 + $0x41] sm:$0xff]
      %v388 = vld [vmem:[#allocation2 + $0x51] sm:$0xff]
      %v389 = vld [vmem:[#allocation2 + $0x61] sm:$0xff]
      %v390 = vld [vmem:[#allocation2 + $0x71] sm:$0xff]
      %s391 = scalar_lea.vmem %s1, 4
      %v392 = vld [vmem:[%s391] sm:$0xf]
      %v394 = vsel %vm343, %v383, 0
      %v397 = vsel %vm343, %v384, 0
      %v400 = vsel %vm343, %v385, 0
      %v403 = vsel %vm343, %v386, 0
      %v406 = vsel %vm343, %v387, 0
      %v409 = vsel %vm343, %v388, 0
      %v412 = vsel %vm343, %v389, 0
      %v415 = vsel %vm343, %v390, 0
      %vm417 = vcmask 1043456
      %v419 = vsel %vm417, %v392, 0
      %421 = vmatpush.msra.mxu0 0.0
      %422 = vmatpush.msra.mxu0 0.0
      %423 = vmatpush.msra.mxu0 0.0
      %424 = vmatpush.msra.mxu0 0.0
      %425 = vmatpush.msra.mxu0 0.0
      %426 = vmatpush.msra.mxu0 0.0
      %427 = vmatpush.msra.mxu0 0.0
      %428 = vmatpush.msra.mxu0 0.0
      %429 = vmatpush.msra.mxu0 0.0
      %430 = vmatpush.msra.mxu0 0.0
      %431 = vmatpush.msra.mxu0 0.0
      %432 = vmatpush.msra.mxu0 0.0
      %433 = vmatpush.msra.mxu0 0.0
      %434 = vmatpush.msra.mxu0 0.0
      %435 = vmatpush.msra.mxu0 0.0
      %436 = vmatpush.msra.mxu0 %v419
      %437 = vmatmul.f32.gmra.mxu0 %v394
      %v438 = vpop.f32.mrf.mxu0
      %v439 = vadd.f32 0.0, %v438
      %440 = vmatmul.f32.gmra.mxu0 %v397
      %v441 = vpop.f32.mrf.mxu0
      %v442 = vadd.f32 0.0, %v441
      %443 = vmatmul.f32.gmra.mxu0 %v400
      %v444 = vpop.f32.mrf.mxu0
      %v445 = vadd.f32 0.0, %v444
      %446 = vmatmul.f32.gmra.mxu0 %v403
      %v447 = vpop.f32.mrf.mxu0
      %v448 = vadd.f32 0.0, %v447
      %449 = vmatmul.f32.gmra.mxu0 %v406
      %v450 = vpop.f32.mrf.mxu0
      %v451 = vadd.f32 0.0, %v450
      %452 = vmatmul.f32.gmra.mxu0 %v409
      %v453 = vpop.f32.mrf.mxu0
      %v454 = vadd.f32 0.0, %v453
      %455 = vmatmul.f32.gmra.mxu0 %v412
      %v456 = vpop.f32.mrf.mxu0
      %v457 = vadd.f32 0.0, %v456
      %458 = vmatmul.f32.gmra.mxu0 %v415
      %v459 = vpop.f32.mrf.mxu0
      %v460 = vadd.f32 0.0, %v459
      %461 = vdwg.mxu0
      %v463 = vsel %vm343, %v374, 0
      %v466 = vsel %vm343, %v375, 0
      %v469 = vsel %vm343, %v376, 0
      %v472 = vsel %vm343, %v377, 0
      %v475 = vsel %vm343, %v378, 0
      %v478 = vsel %vm343, %v379, 0
      %v481 = vsel %vm343, %v380, 0
      %v484 = vsel %vm343, %v381, 0
      %v487 = vsel %vm417, %v382, 0
      %489 = vmatpush.msra.mxu0 0.0
      %490 = vmatpush.msra.mxu0 0.0
      %491 = vmatpush.msra.mxu0 0.0
      %492 = vmatpush.msra.mxu0 0.0
      %493 = vmatpush.msra.mxu0 0.0
      %494 = vmatpush.msra.mxu0 0.0
      %495 = vmatpush.msra.mxu0 0.0
      %496 = vmatpush.msra.mxu0 0.0
      %497 = vmatpush.msra.mxu0 0.0
      %498 = vmatpush.msra.mxu0 0.0
      %499 = vmatpush.msra.mxu0 0.0
      %500 = vmatpush.msra.mxu0 0.0
      %501 = vmatpush.msra.mxu0 0.0
      %502 = vmatpush.msra.mxu0 0.0
      %503 = vmatpush.msra.mxu0 0.0
      %504 = vmatpush.msra.mxu0 %v487
      %505 = vmatmul.f32.gmra.mxu0 %v463
      %v506 = vpop.f32.mrf.mxu0
      %v507 = vadd.f32 %v439, %v506
      %508 = vmatmul.f32.gmra.mxu0 %v466
      %v509 = vpop.f32.mrf.mxu0
      %v510 = vadd.f32 %v442, %v509
      %511 = vmatmul.f32.gmra.mxu0 %v469
      %v512 = vpop.f32.mrf.mxu0
      %v513 = vadd.f32 %v445, %v512
      %514 = vmatmul.f32.gmra.mxu0 %v472
      %v515 = vpop.f32.mrf.mxu0
      %v516 = vadd.f32 %v448, %v515
      %517 = vmatmul.f32.gmra.mxu0 %v475
      %v518 = vpop.f32.mrf.mxu0
      %v519 = vadd.f32 %v451, %v518
      %520 = vmatmul.f32.gmra.mxu0 %v478
      %v521 = vpop.f32.mrf.mxu0
      %v522 = vadd.f32 %v454, %v521
      %523 = vmatmul.f32.gmra.mxu0 %v481
      %v524 = vpop.f32.mrf.mxu0
      %v525 = vadd.f32 %v457, %v524
      %526 = vmatmul.f32.gmra.mxu0 %v484
      %v527 = vpop.f32.mrf.mxu0
      %v528 = vadd.f32 %v460, %v527
      %529 = vdwg.mxu0
      %v530 = vld [vmem:[#allocation2 + $0x2] sm:$0xff]
      %v531 = vld [vmem:[#allocation2 + $0x12] sm:$0xff]
      %v532 = vld [vmem:[#allocation2 + $0x22] sm:$0xff]
      %v533 = vld [vmem:[#allocation2 + $0x32] sm:$0xff]
      %v534 = vld [vmem:[#allocation2 + $0x42] sm:$0xff]
      %v535 = vld [vmem:[#allocation2 + $0x52] sm:$0xff]
      %v536 = vld [vmem:[#allocation2 + $0x62] sm:$0xff]
      %v537 = vld [vmem:[#allocation2 + $0x72] sm:$0xff]
      %s538 = scalar_lea.vmem %s1, 8
      %v539 = vld [vmem:[%s538] sm:$0xf]
      %v541 = vsel %vm343, %v530, 0
      %v544 = vsel %vm343, %v531, 0
      %v547 = vsel %vm343, %v532, 0
      %v550 = vsel %vm343, %v533, 0
      %v553 = vsel %vm343, %v534, 0
      %v556 = vsel %vm343, %v535, 0
      %v559 = vsel %vm343, %v536, 0
      %v562 = vsel %vm343, %v537, 0
      %v565 = vsel %vm417, %v539, 0
      %567 = vmatpush.msra.mxu0 0.0
      %568 = vmatpush.msra.mxu0 0.0
      %569 = vmatpush.msra.mxu0 0.0
      %570 = vmatpush.msra.mxu0 0.0
      %571 = vmatpush.msra.mxu0 0.0
      %572 = vmatpush.msra.mxu0 0.0
      %573 = vmatpush.msra.mxu0 0.0
      %574 = vmatpush.msra.mxu0 0.0
      %575 = vmatpush.msra.mxu0 0.0
      %576 = vmatpush.msra.mxu0 0.0
      %577 = vmatpush.msra.mxu0 0.0
      %578 = vmatpush.msra.mxu0 0.0
      %579 = vmatpush.msra.mxu0 0.0
      %580 = vmatpush.msra.mxu0 0.0
      %581 = vmatpush.msra.mxu0 0.0
      %582 = vmatpush.msra.mxu0 %v565
      %583 = vmatmul.f32.gmra.mxu0 %v541
      %v584 = vpop.f32.mrf.mxu0
      %v585 = vadd.f32 0.0, %v584
      %586 = vmatmul.f32.gmra.mxu0 %v544
      %v587 = vpop.f32.mrf.mxu0
      %v588 = vadd.f32 0.0, %v587
      %589 = vmatmul.f32.gmra.mxu0 %v547
      %v590 = vpop.f32.mrf.mxu0
      %v591 = vadd.f32 0.0, %v590
      %592 = vmatmul.f32.gmra.mxu0 %v550
      %v593 = vpop.f32.mrf.mxu0
      %v594 = vadd.f32 0.0, %v593
      %595 = vmatmul.f32.gmra.mxu0 %v553
      %v596 = vpop.f32.mrf.mxu0
      %v597 = vadd.f32 0.0, %v596
      %598 = vmatmul.f32.gmra.mxu0 %v556
      %v599 = vpop.f32.mrf.mxu0
      %v600 = vadd.f32 0.0, %v599
      %601 = vmatmul.f32.gmra.mxu0 %v559
      %v602 = vpop.f32.mrf.mxu0
      %v603 = vadd.f32 0.0, %v602
      %604 = vmatmul.f32.gmra.mxu0 %v562
      %v605 = vpop.f32.mrf.mxu0
      %v606 = vadd.f32 0.0, %v605
      %607 = vdwg.mxu0
      %v608 = vadd.f32 %v507, %v585
      %v609 = vadd.f32 %v510, %v588
      %v610 = vadd.f32 %v513, %v591
      %v611 = vadd.f32 %v516, %v594
      %v612 = vadd.f32 %v519, %v597
      %v613 = vadd.f32 %v522, %v600
      %v614 = vadd.f32 %v525, %v603
      %v615 = vadd.f32 %v528, %v606
      %v616 = vld [vmem:[%s365] sm:$0xff]
      %v617 = vld [vmem:[%s365 + $0x10] sm:$0xff]
      %v618 = vld [vmem:[%s365 + $0x20] sm:$0xff]
      %v619 = vld [vmem:[%s365 + $0x30] sm:$0xff]
      %v620 = vld [vmem:[%s365 + $0x40] sm:$0xff]
      %v621 = vld [vmem:[%s365 + $0x50] sm:$0xff]
      %v622 = vld [vmem:[%s365 + $0x60] sm:$0xff]
      %v623 = vld [vmem:[%s365 + $0x70] sm:$0xff]
      %s624 = scalar_lea.vmem %s1, 12
      %v625 = vld [vmem:[%s624] sm:$0xf]
      %v627 = vsel %vm343, %v616, 0
      %v630 = vsel %vm343, %v617, 0
      %v633 = vsel %vm343, %v618, 0
      %v636 = vsel %vm343, %v619, 0
      %v639 = vsel %vm343, %v620, 0
      %v642 = vsel %vm343, %v621, 0
      %v645 = vsel %vm343, %v622, 0
      %v648 = vsel %vm343, %v623, 0
      %v651 = vsel %vm417, %v625, 0
      %653 = vmatpush.msra.mxu0 0.0
      %654 = vmatpush.msra.mxu0 0.0
      %655 = vmatpush.msra.mxu0 0.0
      %656 = vmatpush.msra.mxu0 0.0
      %657 = vmatpush.msra.mxu0 0.0
      %658 = vmatpush.msra.mxu0 0.0
      %659 = vmatpush.msra.mxu0 0.0
      %660 = vmatpush.msra.mxu0 0.0
      %661 = vmatpush.msra.mxu0 0.0
      %662 = vmatpush.msra.mxu0 0.0
      %663 = vmatpush.msra.mxu0 0.0
      %664 = vmatpush.msra.mxu0 0.0
      %665 = vmatpush.msra.mxu0 0.0
      %666 = vmatpush.msra.mxu0 0.0
      %667 = vmatpush.msra.mxu0 0.0
      %668 = vmatpush.msra.mxu0 %v651
      %669 = vmatmul.f32.gmra.mxu0 %v627
      %v670 = vpop.f32.mrf.mxu0
      %v671 = vadd.f32 0.0, %v670
      %672 = vmatmul.f32.gmra.mxu0 %v630
      %v673 = vpop.f32.mrf.mxu0
      %v674 = vadd.f32 0.0, %v673
      %675 = vmatmul.f32.gmra.mxu0 %v633
      %v676 = vpop.f32.mrf.mxu0
      %v677 = vadd.f32 0.0, %v676
      %678 = vmatmul.f32.gmra.mxu0 %v636
      %v679 = vpop.f32.mrf.mxu0
      %v680 = vadd.f32 0.0, %v679
      %681 = vmatmul.f32.gmra.mxu0 %v639
      %v682 = vpop.f32.mrf.mxu0
      %v683 = vadd.f32 0.0, %v682
      %684 = vmatmul.f32.gmra.mxu0 %v642
      %v685 = vpop.f32.mrf.mxu0
      %v686 = vadd.f32 0.0, %v685
      %687 = vmatmul.f32.gmra.mxu0 %v645
      %v688 = vpop.f32.mrf.mxu0
      %v689 = vadd.f32 0.0, %v688
      %690 = vmatmul.f32.gmra.mxu0 %v648
      %v691 = vpop.f32.mrf.mxu0
      %v692 = vadd.f32 0.0, %v691
      %693 = vdwg.mxu0
      %v694 = vadd.f32 %v608, %v671
      %v695 = vadd.f32 %v609, %v674
      %v696 = vadd.f32 %v610, %v677
      %v697 = vadd.f32 %v611, %v680
      %v698 = vadd.f32 %v612, %v683
      %v699 = vadd.f32 %v613, %v686
      %v700 = vadd.f32 %v614, %v689
      %v701 = vadd.f32 %v615, %v692
      %v702 = vld [vmem:[%s365 + $0x1] sm:$0xff]
      %v703 = vld [vmem:[%s365 + $0x11] sm:$0xff]
      %v704 = vld [vmem:[%s365 + $0x21] sm:$0xff]
      %v705 = vld [vmem:[%s365 + $0x31] sm:$0xff]
      %v706 = vld [vmem:[%s365 + $0x41] sm:$0xff]
      %v707 = vld [vmem:[%s365 + $0x51] sm:$0xff]
      %v708 = vld [vmem:[%s365 + $0x61] sm:$0xff]
      %v709 = vld [vmem:[%s365 + $0x71] sm:$0xff]
      %s710 = scalar_lea.vmem %s1, 16
      %v711 = vld [vmem:[%s710] sm:$0xf]
      %v713 = vsel %vm343, %v702, 0
      %v716 = vsel %vm343, %v703, 0
      %v719 = vsel %vm343, %v704, 0
      %v722 = vsel %vm343, %v705, 0
      %v725 = vsel %vm343, %v706, 0
      %v728 = vsel %vm343, %v707, 0
      %v731 = vsel %vm343, %v708, 0
      %v734 = vsel %vm343, %v709, 0
      %v737 = vsel %vm417, %v711, 0
      %739 = vmatpush.msra.mxu0 0.0
      %740 = vmatpush.msra.mxu0 0.0
      %741 = vmatpush.msra.mxu0 0.0
      %742 = vmatpush.msra.mxu0 0.0
      %743 = vmatpush.msra.mxu0 0.0
      %744 = vmatpush.msra.mxu0 0.0
      %745 = vmatpush.msra.mxu0 0.0
      %746 = vmatpush.msra.mxu0 0.0
      %747 = vmatpush.msra.mxu0 0.0
      %748 = vmatpush.msra.mxu0 0.0
      %749 = vmatpush.msra.mxu0 0.0
      %750 = vmatpush.msra.mxu0 0.0
      %751 = vmatpush.msra.mxu0 0.0
      %752 = vmatpush.msra.mxu0 0.0
      %753 = vmatpush.msra.mxu0 0.0
      %754 = vmatpush.msra.mxu0 %v737
      %755 = vmatmul.f32.gmra.mxu0 %v713
      %v756 = vpop.f32.mrf.mxu0
      %v757 = vadd.f32 0.0, %v756
      %758 = vmatmul.f32.gmra.mxu0 %v716
      %v759 = vpop.f32.mrf.mxu0
      %v760 = vadd.f32 0.0, %v759
      %761 = vmatmul.f32.gmra.mxu0 %v719
      %v762 = vpop.f32.mrf.mxu0
      %v763 = vadd.f32 0.0, %v762
      %764 = vmatmul.f32.gmra.mxu0 %v722
      %v765 = vpop.f32.mrf.mxu0
      %v766 = vadd.f32 0.0, %v765
      %767 = vmatmul.f32.gmra.mxu0 %v725
      %v768 = vpop.f32.mrf.mxu0
      %v769 = vadd.f32 0.0, %v768
      %770 = vmatmul.f32.gmra.mxu0 %v728
      %v771 = vpop.f32.mrf.mxu0
      %v772 = vadd.f32 0.0, %v771
      %773 = vmatmul.f32.gmra.mxu0 %v731
      %v774 = vpop.f32.mrf.mxu0
      %v775 = vadd.f32 0.0, %v774
      %776 = vmatmul.f32.gmra.mxu0 %v734
      %v777 = vpop.f32.mrf.mxu0
      %v778 = vadd.f32 0.0, %v777
      %779 = vdwg.mxu0
      %v780 = vadd.f32 %v694, %v757
      %v781 = vadd.f32 %v695, %v760
      %v782 = vadd.f32 %v696, %v763
      %v783 = vadd.f32 %v697, %v766
      %v784 = vadd.f32 %v698, %v769
      %v785 = vadd.f32 %v699, %v772
      %v786 = vadd.f32 %v700, %v775
      %v787 = vadd.f32 %v701, %v778
      %v788 = vld [vmem:[%s365 + $0x2] sm:$0xff]
      %v789 = vld [vmem:[%s365 + $0x12] sm:$0xff]
      %v790 = vld [vmem:[%s365 + $0x22] sm:$0xff]
      %v791 = vld [vmem:[%s365 + $0x32] sm:$0xff]
      %v792 = vld [vmem:[%s365 + $0x42] sm:$0xff]
      %v793 = vld [vmem:[%s365 + $0x52] sm:$0xff]
      %v794 = vld [vmem:[%s365 + $0x62] sm:$0xff]
      %v795 = vld [vmem:[%s365 + $0x72] sm:$0xff]
      %s796 = scalar_lea.vmem %s1, 20
      %v797 = vld [vmem:[%s796] sm:$0xf]
      %v799 = vsel %vm343, %v788, 0
      %v802 = vsel %vm343, %v789, 0
      %v805 = vsel %vm343, %v790, 0
      %v808 = vsel %vm343, %v791, 0
      %v811 = vsel %vm343, %v792, 0
      %v814 = vsel %vm343, %v793, 0
      %v817 = vsel %vm343, %v794, 0
      %v820 = vsel %vm343, %v795, 0
      %v823 = vsel %vm417, %v797, 0
      %825 = vmatpush.msra.mxu0 0.0
      %826 = vmatpush.msra.mxu0 0.0
      %827 = vmatpush.msra.mxu0 0.0
      %828 = vmatpush.msra.mxu0 0.0
      %829 = vmatpush.msra.mxu0 0.0
      %830 = vmatpush.msra.mxu0 0.0
      %831 = vmatpush.msra.mxu0 0.0
      %832 = vmatpush.msra.mxu0 0.0
      %833 = vmatpush.msra.mxu0 0.0
      %834 = vmatpush.msra.mxu0 0.0
      %835 = vmatpush.msra.mxu0 0.0
      %836 = vmatpush.msra.mxu0 0.0
      %837 = vmatpush.msra.mxu0 0.0
      %838 = vmatpush.msra.mxu0 0.0
      %839 = vmatpush.msra.mxu0 0.0
      %840 = vmatpush.msra.mxu0 %v823
      %841 = vmatmul.f32.gmra.mxu0 %v799
      %v842 = vpop.f32.mrf.mxu0
      %v843 = vadd.f32 0.0, %v842
      %844 = vmatmul.f32.gmra.mxu0 %v802
      %v845 = vpop.f32.mrf.mxu0
      %v846 = vadd.f32 0.0, %v845
      %847 = vmatmul.f32.gmra.mxu0 %v805
      %v848 = vpop.f32.mrf.mxu0
      %v849 = vadd.f32 0.0, %v848
      %850 = vmatmul.f32.gmra.mxu0 %v808
      %v851 = vpop.f32.mrf.mxu0
      %v852 = vadd.f32 0.0, %v851
      %853 = vmatmul.f32.gmra.mxu0 %v811
      %v854 = vpop.f32.mrf.mxu0
      %v855 = vadd.f32 0.0, %v854
      %856 = vmatmul.f32.gmra.mxu0 %v814
      %v857 = vpop.f32.mrf.mxu0
      %v858 = vadd.f32 0.0, %v857
      %859 = vmatmul.f32.gmra.mxu0 %v817
      %v860 = vpop.f32.mrf.mxu0
      %v861 = vadd.f32 0.0, %v860
      %862 = vmatmul.f32.gmra.mxu0 %v820
      %v863 = vpop.f32.mrf.mxu0
      %v864 = vadd.f32 0.0, %v863
      %865 = vdwg.mxu0
      %v866 = vadd.f32 %v780, %v843
      %v867 = vadd.f32 %v781, %v846
      %v868 = vadd.f32 %v782, %v849
      %v869 = vadd.f32 %v783, %v852
      %v870 = vadd.f32 %v784, %v855
      %v871 = vadd.f32 %v785, %v858
      %v872 = vadd.f32 %v786, %v861
      %v873 = vadd.f32 %v787, %v864
      %s874 = scalar_lea.vmem [#allocation2], 32
      %v875 = vld [vmem:[%s874] sm:$0xff]
      %v876 = vld [vmem:[%s874 + $0x10] sm:$0xff]
      %v877 = vld [vmem:[%s874 + $0x20] sm:$0xff]
      %v878 = vld [vmem:[%s874 + $0x30] sm:$0xff]
      %v879 = vld [vmem:[%s874 + $0x40] sm:$0xff]
      %v880 = vld [vmem:[%s874 + $0x50] sm:$0xff]
      %v881 = vld [vmem:[%s874 + $0x60] sm:$0xff]
      %v882 = vld [vmem:[%s874 + $0x70] sm:$0xff]
      %s883 = scalar_lea.vmem %s1, 24
      %v884 = vld [vmem:[%s883] sm:$0xf]
      %v886 = vsel %vm343, %v875, 0
      %v889 = vsel %vm343, %v876, 0
      %v892 = vsel %vm343, %v877, 0
      %v895 = vsel %vm343, %v878, 0
      %v898 = vsel %vm343, %v879, 0
      %v901 = vsel %vm343, %v880, 0
      %v904 = vsel %vm343, %v881, 0
      %v907 = vsel %vm343, %v882, 0
      %v910 = vsel %vm417, %v884, 0
      %912 = vmatpush.msra.mxu0 0.0
      %913 = vmatpush.msra.mxu0 0.0
      %914 = vmatpush.msra.mxu0 0.0
      %915 = vmatpush.msra.mxu0 0.0
      %916 = vmatpush.msra.mxu0 0.0
      %917 = vmatpush.msra.mxu0 0.0
      %918 = vmatpush.msra.mxu0 0.0
      %919 = vmatpush.msra.mxu0 0.0
      %920 = vmatpush.msra.mxu0 0.0
      %921 = vmatpush.msra.mxu0 0.0
      %922 = vmatpush.msra.mxu0 0.0
      %923 = vmatpush.msra.mxu0 0.0
      %924 = vmatpush.msra.mxu0 0.0
      %925 = vmatpush.msra.mxu0 0.0
      %926 = vmatpush.msra.mxu0 0.0
      %927 = vmatpush.msra.mxu0 %v910
      %928 = vmatmul.f32.gmra.mxu0 %v886
      %v929 = vpop.f32.mrf.mxu0
      %v930 = vadd.f32 0.0, %v929
      %931 = vmatmul.f32.gmra.mxu0 %v889
      %v932 = vpop.f32.mrf.mxu0
      %v933 = vadd.f32 0.0, %v932
      %934 = vmatmul.f32.gmra.mxu0 %v892
      %v935 = vpop.f32.mrf.mxu0
      %v936 = vadd.f32 0.0, %v935
      %937 = vmatmul.f32.gmra.mxu0 %v895
      %v938 = vpop.f32.mrf.mxu0
      %v939 = vadd.f32 0.0, %v938
      %940 = vmatmul.f32.gmra.mxu0 %v898
      %v941 = vpop.f32.mrf.mxu0
      %v942 = vadd.f32 0.0, %v941
      %943 = vmatmul.f32.gmra.mxu0 %v901
      %v944 = vpop.f32.mrf.mxu0
      %v945 = vadd.f32 0.0, %v944
      %946 = vmatmul.f32.gmra.mxu0 %v904
      %v947 = vpop.f32.mrf.mxu0
      %v948 = vadd.f32 0.0, %v947
      %949 = vmatmul.f32.gmra.mxu0 %v907
      %v950 = vpop.f32.mrf.mxu0
      %v951 = vadd.f32 0.0, %v950
      %952 = vdwg.mxu0
      %v953 = vadd.f32 %v866, %v930
      %v954 = vadd.f32 %v867, %v933
      %v955 = vadd.f32 %v868, %v936
      %v956 = vadd.f32 %v869, %v939
      %v957 = vadd.f32 %v870, %v942
      %v958 = vadd.f32 %v871, %v945
      %v959 = vadd.f32 %v872, %v948
      %v960 = vadd.f32 %v873, %v951
      %v961 = vld [vmem:[%s874 + $0x1] sm:$0xff]
      %v962 = vld [vmem:[%s874 + $0x11] sm:$0xff]
      %v963 = vld [vmem:[%s874 + $0x21] sm:$0xff]
      %v964 = vld [vmem:[%s874 + $0x31] sm:$0xff]
      %v965 = vld [vmem:[%s874 + $0x41] sm:$0xff]
      %v966 = vld [vmem:[%s874 + $0x51] sm:$0xff]
      %v967 = vld [vmem:[%s874 + $0x61] sm:$0xff]
      %v968 = vld [vmem:[%s874 + $0x71] sm:$0xff]
      %s969 = scalar_lea.vmem %s1, 28
      %v970 = vld [vmem:[%s969] sm:$0xf]
      %v972 = vsel %vm343, %v961, 0
      %v975 = vsel %vm343, %v962, 0
      %v978 = vsel %vm343, %v963, 0
      %v981 = vsel %vm343, %v964, 0
      %v984 = vsel %vm343, %v965, 0
      %v987 = vsel %vm343, %v966, 0
      %v990 = vsel %vm343, %v967, 0
      %v993 = vsel %vm343, %v968, 0
      %v996 = vsel %vm417, %v970, 0
      %998 = vmatpush.msra.mxu0 0.0
      %999 = vmatpush.msra.mxu0 0.0
      %1000 = vmatpush.msra.mxu0 0.0
      %1001 = vmatpush.msra.mxu0 0.0
      %1002 = vmatpush.msra.mxu0 0.0
      %1003 = vmatpush.msra.mxu0 0.0
      %1004 = vmatpush.msra.mxu0 0.0
      %1005 = vmatpush.msra.mxu0 0.0
      %1006 = vmatpush.msra.mxu0 0.0
      %1007 = vmatpush.msra.mxu0 0.0
      %1008 = vmatpush.msra.mxu0 0.0
      %1009 = vmatpush.msra.mxu0 0.0
      %1010 = vmatpush.msra.mxu0 0.0
      %1011 = vmatpush.msra.mxu0 0.0
      %1012 = vmatpush.msra.mxu0 0.0
      %1013 = vmatpush.msra.mxu0 %v996
      %1014 = vmatmul.f32.gmra.mxu0 %v972
      %v1015 = vpop.f32.mrf.mxu0
      %v1016 = vadd.f32 0.0, %v1015
      %1017 = vmatmul.f32.gmra.mxu0 %v975
      %v1018 = vpop.f32.mrf.mxu0
      %v1019 = vadd.f32 0.0, %v1018
      %1020 = vmatmul.f32.gmra.mxu0 %v978
      %v1021 = vpop.f32.mrf.mxu0
      %v1022 = vadd.f32 0.0, %v1021
      %1023 = vmatmul.f32.gmra.mxu0 %v981
      %v1024 = vpop.f32.mrf.mxu0
      %v1025 = vadd.f32 0.0, %v1024
      %1026 = vmatmul.f32.gmra.mxu0 %v984
      %v1027 = vpop.f32.mrf.mxu0
      %v1028 = vadd.f32 0.0, %v1027
      %1029 = vmatmul.f32.gmra.mxu0 %v987
      %v1030 = vpop.f32.mrf.mxu0
      %v1031 = vadd.f32 0.0, %v1030
      %1032 = vmatmul.f32.gmra.mxu0 %v990
      %v1033 = vpop.f32.mrf.mxu0
      %v1034 = vadd.f32 0.0, %v1033
      %1035 = vmatmul.f32.gmra.mxu0 %v993
      %v1036 = vpop.f32.mrf.mxu0
      %v1037 = vadd.f32 0.0, %v1036
      %1038 = vdwg.mxu0
      %v1039 = vadd.f32 %v953, %v1016
      %v1040 = vadd.f32 %v954, %v1019
      %v1041 = vadd.f32 %v955, %v1022
      %v1042 = vadd.f32 %v956, %v1025
      %v1043 = vadd.f32 %v957, %v1028
      %v1044 = vadd.f32 %v958, %v1031
      %v1045 = vadd.f32 %v959, %v1034
      %v1046 = vadd.f32 %v960, %v1037
      %v1047 = vld [vmem:[%s874 + $0x2] sm:$0xff]
      %v1048 = vld [vmem:[%s874 + $0x12] sm:$0xff]
      %v1049 = vld [vmem:[%s874 + $0x22] sm:$0xff]
      %v1050 = vld [vmem:[%s874 + $0x32] sm:$0xff]
      %v1051 = vld [vmem:[%s874 + $0x42] sm:$0xff]
      %v1052 = vld [vmem:[%s874 + $0x52] sm:$0xff]
      %v1053 = vld [vmem:[%s874 + $0x62] sm:$0xff]
      %v1054 = vld [vmem:[%s874 + $0x72] sm:$0xff]
      %s1055 = scalar_lea.vmem %s1, 32
      %v1056 = vld [vmem:[%s1055] sm:$0xf]
      %v1058 = vsel %vm343, %v1047, 0
      %v1061 = vsel %vm343, %v1048, 0
      %v1064 = vsel %vm343, %v1049, 0
      %v1067 = vsel %vm343, %v1050, 0
      %v1070 = vsel %vm343, %v1051, 0
      %v1073 = vsel %vm343, %v1052, 0
      %v1076 = vsel %vm343, %v1053, 0
      %v1079 = vsel %vm343, %v1054, 0
      %v1082 = vsel %vm417, %v1056, 0
      %1084 = vmatpush.msra.mxu0 0.0
      %1085 = vmatpush.msra.mxu0 0.0
      %1086 = vmatpush.msra.mxu0 0.0
      %1087 = vmatpush.msra.mxu0 0.0
      %1088 = vmatpush.msra.mxu0 0.0
      %1089 = vmatpush.msra.mxu0 0.0
      %1090 = vmatpush.msra.mxu0 0.0
      %1091 = vmatpush.msra.mxu0 0.0
      %1092 = vmatpush.msra.mxu0 0.0
      %1093 = vmatpush.msra.mxu0 0.0
      %1094 = vmatpush.msra.mxu0 0.0
      %1095 = vmatpush.msra.mxu0 0.0
      %1096 = vmatpush.msra.mxu0 0.0
      %1097 = vmatpush.msra.mxu0 0.0
      %1098 = vmatpush.msra.mxu0 0.0
      %1099 = vmatpush.msra.mxu0 %v1082
      %1100 = vmatmul.f32.gmra.mxu0 %v1058
      %v1101 = vpop.f32.mrf.mxu0
      %v1102 = vadd.f32 0.0, %v1101
      %1103 = vmatmul.f32.gmra.mxu0 %v1061
      %v1104 = vpop.f32.mrf.mxu0
      %v1105 = vadd.f32 0.0, %v1104
      %1106 = vmatmul.f32.gmra.mxu0 %v1064
      %v1107 = vpop.f32.mrf.mxu0
      %v1108 = vadd.f32 0.0, %v1107
      %1109 = vmatmul.f32.gmra.mxu0 %v1067
      %v1110 = vpop.f32.mrf.mxu0
      %v1111 = vadd.f32 0.0, %v1110
      %1112 = vmatmul.f32.gmra.mxu0 %v1070
      %v1113 = vpop.f32.mrf.mxu0
      %v1114 = vadd.f32 0.0, %v1113
      %1115 = vmatmul.f32.gmra.mxu0 %v1073
      %v1116 = vpop.f32.mrf.mxu0
      %v1117 = vadd.f32 0.0, %v1116
      %1118 = vmatmul.f32.gmra.mxu0 %v1076
      %v1119 = vpop.f32.mrf.mxu0
      %v1120 = vadd.f32 0.0, %v1119
      %1121 = vmatmul.f32.gmra.mxu0 %v1079
      %v1122 = vpop.f32.mrf.mxu0
      %v1123 = vadd.f32 0.0, %v1122
      %1124 = vdwg.mxu0
      %v1125 = vadd.f32 %v1039, %v1102
      %v1126 = vadd.f32 %v1040, %v1105
      %v1127 = vadd.f32 %v1041, %v1108
      %v1128 = vadd.f32 %v1042, %v1111
      %v1129 = vadd.f32 %v1043, %v1114
      %v1130 = vadd.f32 %v1044, %v1117
      %v1131 = vadd.f32 %v1045, %v1120
      %v1132 = vadd.f32 %v1046, %v1123
      %v1133 = vld [vmem:[%s2] sm:$0x1]
      %v1135 = vperm.slane %v1133, 0
      %v1137 = vmul.f32 %v1125, %v1135
      %v1138 = vmul.f32 %v1126, %v1135
      %v1139 = vmul.f32 %v1127, %v1135
      %v1140 = vmul.f32 %v1128, %v1135
      %v1141 = vmul.f32 %v1129, %v1135
      %v1142 = vmul.f32 %v1130, %v1135
      %v1143 = vmul.f32 %v1131, %v1135
      %v1144 = vmul.f32 %v1132, %v1135
      %v1145 = vld [vmem:[%s3] sm:$0x1]
      %v1147 = vperm.slane %v1145, 0
      %v1149 = vadd.f32 %v1137, %v1147
      %v1150 = vadd.f32 %v1138, %v1147
      %v1151 = vadd.f32 %v1139, %v1147
      %v1152 = vadd.f32 %v1140, %v1147
      %v1153 = vadd.f32 %v1141, %v1147
      %v1154 = vadd.f32 %v1142, %v1147
      %v1155 = vadd.f32 %v1143, %v1147
      %v1156 = vadd.f32 %v1144, %v1147
      %v1157 = vmax.f32 %v1149, 0.0
      %v1158 = vmax.f32 %v1150, 0.0
      %v1159 = vmax.f32 %v1151, 0.0
      %v1160 = vmax.f32 %v1152, 0.0
      %v1161 = vmax.f32 %v1153, 0.0
      %v1162 = vmax.f32 %v1154, 0.0
      %v1163 = vmax.f32 %v1155, 0.0
      %v1164 = vmax.f32 %v1156, 0.0
      %vm1165 = vcmask 64512
      %1166 = vst.msk [vmem:[#allocation3] sm:$0xff] %vm1165, 0.0
      %vm1167 = vcmask 58368
      %1168 = vst.msk [vmem:[#allocation3 + $0x8] sm:$0x3] %vm1167, 0.0
      %1169 = vst.msk [vmem:[#allocation3 + $0x10] sm:$0xff] %vm1165, 0.0
      %1170 = vst.msk [vmem:[#allocation3 + $0x18] sm:$0x3] %vm1167, 0.0
      %1171 = vst.msk [vmem:[#allocation3 + $0x20] sm:$0xff] %vm1165, 0.0
      %1172 = vst.msk [vmem:[#allocation3 + $0x28] sm:$0x3] %vm1167, 0.0
      %1173 = vst.msk [vmem:[#allocation3 + $0x30] sm:$0xff] %vm1165, 0.0
      %1174 = vst.msk [vmem:[#allocation3 + $0x38] sm:$0x3] %vm1167, 0.0
      %1175 = vst.msk [vmem:[#allocation3 + $0x40] sm:$0xff] %vm1165, 0.0
      %1176 = vst.msk [vmem:[#allocation3 + $0x48] sm:$0x3] %vm1167, 0.0
      %1177 = vst.msk [vmem:[#allocation3 + $0x50] sm:$0xff] %vm1165, 0.0
      %1178 = vst.msk [vmem:[#allocation3 + $0x58] sm:$0x3] %vm1167, 0.0
      %1179 = vst.msk [vmem:[#allocation3 + $0x60] sm:$0xff] %vm1165, 0.0
      %1180 = vst.msk [vmem:[#allocation3 + $0x68] sm:$0x3] %vm1167, 0.0
      %1181 = vst.msk [vmem:[#allocation3 + $0x70] sm:$0xff] %vm1165, 0.0
      %1182 = vst.msk [vmem:[#allocation3 + $0x78] sm:$0x3] %vm1167, 0.0
      %1183 = vst.msk [vmem:[#allocation3 + $0x80] sm:$0xff] %vm1165, 0.0
      %1184 = vst.msk [vmem:[#allocation3 + $0x88] sm:$0x3] %vm1167, 0.0
      %1185 = vst.msk [vmem:[#allocation3 + $0x90] sm:$0xff] %vm1165, 0.0
      %1186 = vst.msk [vmem:[#allocation3 + $0x98] sm:$0x3] %vm1167, 0.0
      %s1187 = scalar_lea.vmem [#allocation3], 16
      %1188 = vst.msk [vmem:[%s1187 + $0x1] sm:$0xff] %vm1165, %v1157
      %1189 = vst.msk [vmem:[%s1187 + $0x11] sm:$0xff] %vm1165, %v1158
      %1190 = vst.msk [vmem:[%s1187 + $0x21] sm:$0xff] %vm1165, %v1159
      %1191 = vst.msk [vmem:[%s1187 + $0x31] sm:$0xff] %vm1165, %v1160
      %1192 = vst.msk [vmem:[%s1187 + $0x41] sm:$0xff] %vm1165, %v1161
      %1193 = vst.msk [vmem:[%s1187 + $0x51] sm:$0xff] %vm1165, %v1162
      %1194 = vst.msk [vmem:[%s1187 + $0x61] sm:$0xff] %vm1165, %v1163
      %1195 = vst.msk [vmem:[%s1187 + $0x71] sm:$0xff] %vm1165, %v1164
      %v1196 = vld [vmem:[#allocation3] sm:$0xff]
      %v1197 = vld [vmem:[#allocation3 + $0x10] sm:$0xff]
      %v1198 = vld [vmem:[#allocation3 + $0x20] sm:$0xff]
      %v1199 = vld [vmem:[#allocation3 + $0x30] sm:$0xff]
      %v1200 = vld [vmem:[#allocation3 + $0x40] sm:$0xff]
      %v1201 = vld [vmem:[#allocation3 + $0x50] sm:$0xff]
      %v1202 = vld [vmem:[#allocation3 + $0x60] sm:$0xff]
      %v1203 = vld [vmem:[#allocation3 + $0x70] sm:$0xff]
      %v1204 = vld [vmem:[%s4] sm:$0xff]
      %v1205 = vld [vmem:[#allocation3 + $0x1] sm:$0xff]
      %v1206 = vld [vmem:[#allocation3 + $0x11] sm:$0xff]
      %v1207 = vld [vmem:[#allocation3 + $0x21] sm:$0xff]
      %v1208 = vld [vmem:[#allocation3 + $0x31] sm:$0xff]
      %v1209 = vld [vmem:[#allocation3 + $0x41] sm:$0xff]
      %v1210 = vld [vmem:[#allocation3 + $0x51] sm:$0xff]
      %v1211 = vld [vmem:[#allocation3 + $0x61] sm:$0xff]
      %v1212 = vld [vmem:[#allocation3 + $0x71] sm:$0xff]
      %s1213 = scalar_lea.vmem %s4, 8
      %v1214 = vld [vmem:[%s1213] sm:$0xff]
      %v1216 = vsel %vm1165, %v1205, 0
      %v1219 = vsel %vm1165, %v1206, 0
      %v1222 = vsel %vm1165, %v1207, 0
      %v1225 = vsel %vm1165, %v1208, 0
      %v1228 = vsel %vm1165, %v1209, 0
      %v1231 = vsel %vm1165, %v1210, 0
      %v1234 = vsel %vm1165, %v1211, 0
      %v1237 = vsel %vm1165, %v1212, 0
      %1239 = vmatpush.msra.mxu0 0.0
      %1240 = vmatpush.msra.mxu0 0.0
      %1241 = vmatpush.msra.mxu0 0.0
      %1242 = vmatpush.msra.mxu0 0.0
      %1243 = vmatpush.msra.mxu0 0.0
      %1244 = vmatpush.msra.mxu0 0.0
      %1245 = vmatpush.msra.mxu0 0.0
      %1246 = vmatpush.msra.mxu0 0.0
      %1247 = vmatpush.msra.mxu0 0.0
      %1248 = vmatpush.msra.mxu0 0.0
      %1249 = vmatpush.msra.mxu0 0.0
      %1250 = vmatpush.msra.mxu0 0.0
      %1251 = vmatpush.msra.mxu0 0.0
      %1252 = vmatpush.msra.mxu0 0.0
      %1253 = vmatpush.msra.mxu0 0.0
      %1254 = vmatpush.msra.mxu0 %v1214
      %1255 = vmatmul.f32.gmra.mxu0 %v1216
      %v1256 = vpop.f32.mrf.mxu0
      %v1257 = vadd.f32 0.0, %v1256
      %1258 = vmatmul.f32.gmra.mxu0 %v1219
      %v1259 = vpop.f32.mrf.mxu0
      %v1260 = vadd.f32 0.0, %v1259
      %1261 = vmatmul.f32.gmra.mxu0 %v1222
      %v1262 = vpop.f32.mrf.mxu0
      %v1263 = vadd.f32 0.0, %v1262
      %1264 = vmatmul.f32.gmra.mxu0 %v1225
      %v1265 = vpop.f32.mrf.mxu0
      %v1266 = vadd.f32 0.0, %v1265
      %1267 = vmatmul.f32.gmra.mxu0 %v1228
      %v1268 = vpop.f32.mrf.mxu0
      %v1269 = vadd.f32 0.0, %v1268
      %1270 = vmatmul.f32.gmra.mxu0 %v1231
      %v1271 = vpop.f32.mrf.mxu0
      %v1272 = vadd.f32 0.0, %v1271
      %1273 = vmatmul.f32.gmra.mxu0 %v1234
      %v1274 = vpop.f32.mrf.mxu0
      %v1275 = vadd.f32 0.0, %v1274
      %1276 = vmatmul.f32.gmra.mxu0 %v1237
      %v1277 = vpop.f32.mrf.mxu0
      %v1278 = vadd.f32 0.0, %v1277
      %1279 = vdwg.mxu0
      %v1281 = vsel %vm1165, %v1196, 0
      %v1284 = vsel %vm1165, %v1197, 0
      %v1287 = vsel %vm1165, %v1198, 0
      %v1290 = vsel %vm1165, %v1199, 0
      %v1293 = vsel %vm1165, %v1200, 0
      %v1296 = vsel %vm1165, %v1201, 0
      %v1299 = vsel %vm1165, %v1202, 0
      %v1302 = vsel %vm1165, %v1203, 0
      %1304 = vmatpush.msra.mxu0 0.0
      %1305 = vmatpush.msra.mxu0 0.0
      %1306 = vmatpush.msra.mxu0 0.0
      %1307 = vmatpush.msra.mxu0 0.0
      %1308 = vmatpush.msra.mxu0 0.0
      %1309 = vmatpush.msra.mxu0 0.0
      %1310 = vmatpush.msra.mxu0 0.0
      %1311 = vmatpush.msra.mxu0 0.0
      %1312 = vmatpush.msra.mxu0 0.0
      %1313 = vmatpush.msra.mxu0 0.0
      %1314 = vmatpush.msra.mxu0 0.0
      %1315 = vmatpush.msra.mxu0 0.0
      %1316 = vmatpush.msra.mxu0 0.0
      %1317 = vmatpush.msra.mxu0 0.0
      %1318 = vmatpush.msra.mxu0 0.0
      %1319 = vmatpush.msra.mxu0 %v1204
      %1320 = vmatmul.f32.gmra.mxu0 %v1281
      %v1321 = vpop.f32.mrf.mxu0
      %v1322 = vadd.f32 %v1257, %v1321
      %1323 = vmatmul.f32.gmra.mxu0 %v1284
      %v1324 = vpop.f32.mrf.mxu0
      %v1325 = vadd.f32 %v1260, %v1324
      %1326 = vmatmul.f32.gmra.mxu0 %v1287
      %v1327 = vpop.f32.mrf.mxu0
      %v1328 = vadd.f32 %v1263, %v1327
      %1329 = vmatmul.f32.gmra.mxu0 %v1290
      %v1330 = vpop.f32.mrf.mxu0
      %v1331 = vadd.f32 %v1266, %v1330
      %1332 = vmatmul.f32.gmra.mxu0 %v1293
      %v1333 = vpop.f32.mrf.mxu0
      %v1334 = vadd.f32 %v1269, %v1333
      %1335 = vmatmul.f32.gmra.mxu0 %v1296
      %v1336 = vpop.f32.mrf.mxu0
      %v1337 = vadd.f32 %v1272, %v1336
      %1338 = vmatmul.f32.gmra.mxu0 %v1299
      %v1339 = vpop.f32.mrf.mxu0
      %v1340 = vadd.f32 %v1275, %v1339
      %1341 = vmatmul.f32.gmra.mxu0 %v1302
      %v1342 = vpop.f32.mrf.mxu0
      %v1343 = vadd.f32 %v1278, %v1342
      %1344 = vdwg.mxu0
      %v1345 = vld [vmem:[#allocation3 + $0x2] sm:$0xff]
      %v1346 = vld [vmem:[#allocation3 + $0x12] sm:$0xff]
      %v1347 = vld [vmem:[#allocation3 + $0x22] sm:$0xff]
      %v1348 = vld [vmem:[#allocation3 + $0x32] sm:$0xff]
      %v1349 = vld [vmem:[#allocation3 + $0x42] sm:$0xff]
      %v1350 = vld [vmem:[#allocation3 + $0x52] sm:$0xff]
      %v1351 = vld [vmem:[#allocation3 + $0x62] sm:$0xff]
      %v1352 = vld [vmem:[#allocation3 + $0x72] sm:$0xff]
      %s1353 = scalar_lea.vmem %s4, 16
      %v1354 = vld [vmem:[%s1353] sm:$0xff]
      %v1356 = vsel %vm1165, %v1345, 0
      %v1359 = vsel %vm1165, %v1346, 0
      %v1362 = vsel %vm1165, %v1347, 0
      %v1365 = vsel %vm1165, %v1348, 0
      %v1368 = vsel %vm1165, %v1349, 0
      %v1371 = vsel %vm1165, %v1350, 0
      %v1374 = vsel %vm1165, %v1351, 0
      %v1377 = vsel %vm1165, %v1352, 0
      %1379 = vmatpush.msra.mxu0 0.0
      %1380 = vmatpush.msra.mxu0 0.0
      %1381 = vmatpush.msra.mxu0 0.0
      %1382 = vmatpush.msra.mxu0 0.0
      %1383 = vmatpush.msra.mxu0 0.0
      %1384 = vmatpush.msra.mxu0 0.0
      %1385 = vmatpush.msra.mxu0 0.0
      %1386 = vmatpush.msra.mxu0 0.0
      %1387 = vmatpush.msra.mxu0 0.0
      %1388 = vmatpush.msra.mxu0 0.0
      %1389 = vmatpush.msra.mxu0 0.0
      %1390 = vmatpush.msra.mxu0 0.0
      %1391 = vmatpush.msra.mxu0 0.0
      %1392 = vmatpush.msra.mxu0 0.0
      %1393 = vmatpush.msra.mxu0 0.0
      %1394 = vmatpush.msra.mxu0 %v1354
      %1395 = vmatmul.f32.gmra.mxu0 %v1356
      %v1396 = vpop.f32.mrf.mxu0
      %v1397 = vadd.f32 0.0, %v1396
      %1398 = vmatmul.f32.gmra.mxu0 %v1359
      %v1399 = vpop.f32.mrf.mxu0
      %v1400 = vadd.f32 0.0, %v1399
      %1401 = vmatmul.f32.gmra.mxu0 %v1362
      %v1402 = vpop.f32.mrf.mxu0
      %v1403 = vadd.f32 0.0, %v1402
      %1404 = vmatmul.f32.gmra.mxu0 %v1365
      %v1405 = vpop.f32.mrf.mxu0
      %v1406 = vadd.f32 0.0, %v1405
      %1407 = vmatmul.f32.gmra.mxu0 %v1368
      %v1408 = vpop.f32.mrf.mxu0
      %v1409 = vadd.f32 0.0, %v1408
      %1410 = vmatmul.f32.gmra.mxu0 %v1371
      %v1411 = vpop.f32.mrf.mxu0
      %v1412 = vadd.f32 0.0, %v1411
      %1413 = vmatmul.f32.gmra.mxu0 %v1374
      %v1414 = vpop.f32.mrf.mxu0
      %v1415 = vadd.f32 0.0, %v1414
      %1416 = vmatmul.f32.gmra.mxu0 %v1377
      %v1417 = vpop.f32.mrf.mxu0
      %v1418 = vadd.f32 0.0, %v1417
      %1419 = vdwg.mxu0
      %v1420 = vadd.f32 %v1322, %v1397
      %v1421 = vadd.f32 %v1325, %v1400
      %v1422 = vadd.f32 %v1328, %v1403
      %v1423 = vadd.f32 %v1331, %v1406
      %v1424 = vadd.f32 %v1334, %v1409
      %v1425 = vadd.f32 %v1337, %v1412
      %v1426 = vadd.f32 %v1340, %v1415
      %v1427 = vadd.f32 %v1343, %v1418
      %v1428 = vld [vmem:[%s1187] sm:$0xff]
      %v1429 = vld [vmem:[%s1187 + $0x10] sm:$0xff]
      %v1430 = vld [vmem:[%s1187 + $0x20] sm:$0xff]
      %v1431 = vld [vmem:[%s1187 + $0x30] sm:$0xff]
      %v1432 = vld [vmem:[%s1187 + $0x40] sm:$0xff]
      %v1433 = vld [vmem:[%s1187 + $0x50] sm:$0xff]
      %v1434 = vld [vmem:[%s1187 + $0x60] sm:$0xff]
      %v1435 = vld [vmem:[%s1187 + $0x70] sm:$0xff]
      %s1436 = scalar_lea.vmem %s4, 24
      %v1437 = vld [vmem:[%s1436] sm:$0xff]
      %v1439 = vsel %vm1165, %v1428, 0
      %v1442 = vsel %vm1165, %v1429, 0
      %v1445 = vsel %vm1165, %v1430, 0
      %v1448 = vsel %vm1165, %v1431, 0
      %v1451 = vsel %vm1165, %v1432, 0
      %v1454 = vsel %vm1165, %v1433, 0
      %v1457 = vsel %vm1165, %v1434, 0
      %v1460 = vsel %vm1165, %v1435, 0
      %1462 = vmatpush.msra.mxu0 0.0
      %1463 = vmatpush.msra.mxu0 0.0
      %1464 = vmatpush.msra.mxu0 0.0
      %1465 = vmatpush.msra.mxu0 0.0
      %1466 = vmatpush.msra.mxu0 0.0
      %1467 = vmatpush.msra.mxu0 0.0
      %1468 = vmatpush.msra.mxu0 0.0
      %1469 = vmatpush.msra.mxu0 0.0
      %1470 = vmatpush.msra.mxu0 0.0
      %1471 = vmatpush.msra.mxu0 0.0
      %1472 = vmatpush.msra.mxu0 0.0
      %1473 = vmatpush.msra.mxu0 0.0
      %1474 = vmatpush.msra.mxu0 0.0
      %1475 = vmatpush.msra.mxu0 0.0
      %1476 = vmatpush.msra.mxu0 0.0
      %1477 = vmatpush.msra.mxu0 %v1437
      %1478 = vmatmul.f32.gmra.mxu0 %v1439
      %v1479 = vpop.f32.mrf.mxu0
      %v1480 = vadd.f32 0.0, %v1479
      %1481 = vmatmul.f32.gmra.mxu0 %v1442
      %v1482 = vpop.f32.mrf.mxu0
      %v1483 = vadd.f32 0.0, %v1482
      %1484 = vmatmul.f32.gmra.mxu0 %v1445
      %v1485 = vpop.f32.mrf.mxu0
      %v1486 = vadd.f32 0.0, %v1485
      %1487 = vmatmul.f32.gmra.mxu0 %v1448
      %v1488 = vpop.f32.mrf.mxu0
      %v1489 = vadd.f32 0.0, %v1488
      %1490 = vmatmul.f32.gmra.mxu0 %v1451
      %v1491 = vpop.f32.mrf.mxu0
      %v1492 = vadd.f32 0.0, %v1491
      %1493 = vmatmul.f32.gmra.mxu0 %v1454
      %v1494 = vpop.f32.mrf.mxu0
      %v1495 = vadd.f32 0.0, %v1494
      %1496 = vmatmul.f32.gmra.mxu0 %v1457
      %v1497 = vpop.f32.mrf.mxu0
      %v1498 = vadd.f32 0.0, %v1497
      %1499 = vmatmul.f32.gmra.mxu0 %v1460
      %v1500 = vpop.f32.mrf.mxu0
      %v1501 = vadd.f32 0.0, %v1500
      %1502 = vdwg.mxu0
      %v1503 = vadd.f32 %v1420, %v1480
      %v1504 = vadd.f32 %v1421, %v1483
      %v1505 = vadd.f32 %v1422, %v1486
      %v1506 = vadd.f32 %v1423, %v1489
      %v1507 = vadd.f32 %v1424, %v1492
      %v1508 = vadd.f32 %v1425, %v1495
      %v1509 = vadd.f32 %v1426, %v1498
      %v1510 = vadd.f32 %v1427, %v1501
      %v1511 = vld [vmem:[%s1187 + $0x1] sm:$0xff]
      %v1512 = vld [vmem:[%s1187 + $0x11] sm:$0xff]
      %v1513 = vld [vmem:[%s1187 + $0x21] sm:$0xff]
      %v1514 = vld [vmem:[%s1187 + $0x31] sm:$0xff]
      %v1515 = vld [vmem:[%s1187 + $0x41] sm:$0xff]
      %v1516 = vld [vmem:[%s1187 + $0x51] sm:$0xff]
      %v1517 = vld [vmem:[%s1187 + $0x61] sm:$0xff]
      %v1518 = vld [vmem:[%s1187 + $0x71] sm:$0xff]
      %s1519 = scalar_lea.vmem %s4, 32
      %v1520 = vld [vmem:[%s1519] sm:$0xff]
      %v1522 = vsel %vm1165, %v1511, 0
      %v1525 = vsel %vm1165, %v1512, 0
      %v1528 = vsel %vm1165, %v1513, 0
      %v1531 = vsel %vm1165, %v1514, 0
      %v1534 = vsel %vm1165, %v1515, 0
      %v1537 = vsel %vm1165, %v1516, 0
      %v1540 = vsel %vm1165, %v1517, 0
      %v1543 = vsel %vm1165, %v1518, 0
      %1545 = vmatpush.msra.mxu0 0.0
      %1546 = vmatpush.msra.mxu0 0.0
      %1547 = vmatpush.msra.mxu0 0.0
      %1548 = vmatpush.msra.mxu0 0.0
      %1549 = vmatpush.msra.mxu0 0.0
      %1550 = vmatpush.msra.mxu0 0.0
      %1551 = vmatpush.msra.mxu0 0.0
      %1552 = vmatpush.msra.mxu0 0.0
      %1553 = vmatpush.msra.mxu0 0.0
      %1554 = vmatpush.msra.mxu0 0.0
      %1555 = vmatpush.msra.mxu0 0.0
      %1556 = vmatpush.msra.mxu0 0.0
      %1557 = vmatpush.msra.mxu0 0.0
      %1558 = vmatpush.msra.mxu0 0.0
      %1559 = vmatpush.msra.mxu0 0.0
      %1560 = vmatpush.msra.mxu0 %v1520
      %1561 = vmatmul.f32.gmra.mxu0 %v1522
      %v1562 = vpop.f32.mrf.mxu0
      %v1563 = vadd.f32 0.0, %v1562
      %1564 = vmatmul.f32.gmra.mxu0 %v1525
      %v1565 = vpop.f32.mrf.mxu0
      %v1566 = vadd.f32 0.0, %v1565
      %1567 = vmatmul.f32.gmra.mxu0 %v1528
      %v1568 = vpop.f32.mrf.mxu0
      %v1569 = vadd.f32 0.0, %v1568
      %1570 = vmatmul.f32.gmra.mxu0 %v1531
      %v1571 = vpop.f32.mrf.mxu0
      %v1572 = vadd.f32 0.0, %v1571
      %1573 = vmatmul.f32.gmra.mxu0 %v1534
      %v1574 = vpop.f32.mrf.mxu0
      %v1575 = vadd.f32 0.0, %v1574
      %1576 = vmatmul.f32.gmra.mxu0 %v1537
      %v1577 = vpop.f32.mrf.mxu0
      %v1578 = vadd.f32 0.0, %v1577
      %1579 = vmatmul.f32.gmra.mxu0 %v1540
      %v1580 = vpop.f32.mrf.mxu0
      %v1581 = vadd.f32 0.0, %v1580
      %1582 = vmatmul.f32.gmra.mxu0 %v1543
      %v1583 = vpop.f32.mrf.mxu0
      %v1584 = vadd.f32 0.0, %v1583
      %1585 = vdwg.mxu0
      %v1586 = vadd.f32 %v1503, %v1563
      %v1587 = vadd.f32 %v1504, %v1566
      %v1588 = vadd.f32 %v1505, %v1569
      %v1589 = vadd.f32 %v1506, %v1572
      %v1590 = vadd.f32 %v1507, %v1575
      %v1591 = vadd.f32 %v1508, %v1578
      %v1592 = vadd.f32 %v1509, %v1581
      %v1593 = vadd.f32 %v1510, %v1584
      %v1594 = vld [vmem:[%s1187 + $0x2] sm:$0xff]
      %v1595 = vld [vmem:[%s1187 + $0x12] sm:$0xff]
      %v1596 = vld [vmem:[%s1187 + $0x22] sm:$0xff]
      %v1597 = vld [vmem:[%s1187 + $0x32] sm:$0xff]
      %v1598 = vld [vmem:[%s1187 + $0x42] sm:$0xff]
      %v1599 = vld [vmem:[%s1187 + $0x52] sm:$0xff]
      %v1600 = vld [vmem:[%s1187 + $0x62] sm:$0xff]
      %v1601 = vld [vmem:[%s1187 + $0x72] sm:$0xff]
      %s1602 = scalar_lea.vmem %s4, 40
      %v1603 = vld [vmem:[%s1602] sm:$0xff]
      %v1605 = vsel %vm1165, %v1594, 0
      %v1608 = vsel %vm1165, %v1595, 0
      %v1611 = vsel %vm1165, %v1596, 0
      %v1614 = vsel %vm1165, %v1597, 0
      %v1617 = vsel %vm1165, %v1598, 0
      %v1620 = vsel %vm1165, %v1599, 0
      %v1623 = vsel %vm1165, %v1600, 0
      %v1626 = vsel %vm1165, %v1601, 0
      %1628 = vmatpush.msra.mxu0 0.0
      %1629 = vmatpush.msra.mxu0 0.0
      %1630 = vmatpush.msra.mxu0 0.0
      %1631 = vmatpush.msra.mxu0 0.0
      %1632 = vmatpush.msra.mxu0 0.0
      %1633 = vmatpush.msra.mxu0 0.0
      %1634 = vmatpush.msra.mxu0 0.0
      %1635 = vmatpush.msra.mxu0 0.0
      %1636 = vmatpush.msra.mxu0 0.0
      %1637 = vmatpush.msra.mxu0 0.0
      %1638 = vmatpush.msra.mxu0 0.0
      %1639 = vmatpush.msra.mxu0 0.0
      %1640 = vmatpush.msra.mxu0 0.0
      %1641 = vmatpush.msra.mxu0 0.0
      %1642 = vmatpush.msra.mxu0 0.0
      %1643 = vmatpush.msra.mxu0 %v1603
      %1644 = vmatmul.f32.gmra.mxu0 %v1605
      %v1645 = vpop.f32.mrf.mxu0
      %v1646 = vadd.f32 0.0, %v1645
      %1647 = vmatmul.f32.gmra.mxu0 %v1608
      %v1648 = vpop.f32.mrf.mxu0
      %v1649 = vadd.f32 0.0, %v1648
      %1650 = vmatmul.f32.gmra.mxu0 %v1611
      %v1651 = vpop.f32.mrf.mxu0
      %v1652 = vadd.f32 0.0, %v1651
      %1653 = vmatmul.f32.gmra.mxu0 %v1614
      %v1654 = vpop.f32.mrf.mxu0
      %v1655 = vadd.f32 0.0, %v1654
      %1656 = vmatmul.f32.gmra.mxu0 %v1617
      %v1657 = vpop.f32.mrf.mxu0
      %v1658 = vadd.f32 0.0, %v1657
      %1659 = vmatmul.f32.gmra.mxu0 %v1620
      %v1660 = vpop.f32.mrf.mxu0
      %v1661 = vadd.f32 0.0, %v1660
      %1662 = vmatmul.f32.gmra.mxu0 %v1623
      %v1663 = vpop.f32.mrf.mxu0
      %v1664 = vadd.f32 0.0, %v1663
      %1665 = vmatmul.f32.gmra.mxu0 %v1626
      %v1666 = vpop.f32.mrf.mxu0
      %v1667 = vadd.f32 0.0, %v1666
      %1668 = vdwg.mxu0
      %v1669 = vadd.f32 %v1586, %v1646
      %v1670 = vadd.f32 %v1587, %v1649
      %v1671 = vadd.f32 %v1588, %v1652
      %v1672 = vadd.f32 %v1589, %v1655
      %v1673 = vadd.f32 %v1590, %v1658
      %v1674 = vadd.f32 %v1591, %v1661
      %v1675 = vadd.f32 %v1592, %v1664
      %v1676 = vadd.f32 %v1593, %v1667
      %s1677 = scalar_lea.vmem [#allocation3], 32
      %v1678 = vld [vmem:[%s1677] sm:$0xff]
      %v1679 = vld [vmem:[%s1677 + $0x10] sm:$0xff]
      %v1680 = vld [vmem:[%s1677 + $0x20] sm:$0xff]
      %v1681 = vld [vmem:[%s1677 + $0x30] sm:$0xff]
      %v1682 = vld [vmem:[%s1677 + $0x40] sm:$0xff]
      %v1683 = vld [vmem:[%s1677 + $0x50] sm:$0xff]
      %v1684 = vld [vmem:[%s1677 + $0x60] sm:$0xff]
      %v1685 = vld [vmem:[%s1677 + $0x70] sm:$0xff]
      %s1686 = scalar_lea.vmem %s4, 48
      %v1687 = vld [vmem:[%s1686] sm:$0xff]
      %v1689 = vsel %vm1165, %v1678, 0
      %v1692 = vsel %vm1165, %v1679, 0
      %v1695 = vsel %vm1165, %v1680, 0
      %v1698 = vsel %vm1165, %v1681, 0
      %v1701 = vsel %vm1165, %v1682, 0
      %v1704 = vsel %vm1165, %v1683, 0
      %v1707 = vsel %vm1165, %v1684, 0
      %v1710 = vsel %vm1165, %v1685, 0
      %1712 = vmatpush.msra.mxu0 0.0
      %1713 = vmatpush.msra.mxu0 0.0
      %1714 = vmatpush.msra.mxu0 0.0
      %1715 = vmatpush.msra.mxu0 0.0
      %1716 = vmatpush.msra.mxu0 0.0
      %1717 = vmatpush.msra.mxu0 0.0
      %1718 = vmatpush.msra.mxu0 0.0
      %1719 = vmatpush.msra.mxu0 0.0
      %1720 = vmatpush.msra.mxu0 0.0
      %1721 = vmatpush.msra.mxu0 0.0
      %1722 = vmatpush.msra.mxu0 0.0
      %1723 = vmatpush.msra.mxu0 0.0
      %1724 = vmatpush.msra.mxu0 0.0
      %1725 = vmatpush.msra.mxu0 0.0
      %1726 = vmatpush.msra.mxu0 0.0
      %1727 = vmatpush.msra.mxu0 %v1687
      %1728 = vmatmul.f32.gmra.mxu0 %v1689
      %v1729 = vpop.f32.mrf.mxu0
      %v1730 = vadd.f32 0.0, %v1729
      %1731 = vmatmul.f32.gmra.mxu0 %v1692
      %v1732 = vpop.f32.mrf.mxu0
      %v1733 = vadd.f32 0.0, %v1732
      %1734 = vmatmul.f32.gmra.mxu0 %v1695
      %v1735 = vpop.f32.mrf.mxu0
      %v1736 = vadd.f32 0.0, %v1735
      %1737 = vmatmul.f32.gmra.mxu0 %v1698
      %v1738 = vpop.f32.mrf.mxu0
      %v1739 = vadd.f32 0.0, %v1738
      %1740 = vmatmul.f32.gmra.mxu0 %v1701
      %v1741 = vpop.f32.mrf.mxu0
      %v1742 = vadd.f32 0.0, %v1741
      %1743 = vmatmul.f32.gmra.mxu0 %v1704
      %v1744 = vpop.f32.mrf.mxu0
      %v1745 = vadd.f32 0.0, %v1744
      %1746 = vmatmul.f32.gmra.mxu0 %v1707
      %v1747 = vpop.f32.mrf.mxu0
      %v1748 = vadd.f32 0.0, %v1747
      %1749 = vmatmul.f32.gmra.mxu0 %v1710
      %v1750 = vpop.f32.mrf.mxu0
      %v1751 = vadd.f32 0.0, %v1750
      %1752 = vdwg.mxu0
      %v1753 = vadd.f32 %v1669, %v1730
      %v1754 = vadd.f32 %v1670, %v1733
      %v1755 = vadd.f32 %v1671, %v1736
      %v1756 = vadd.f32 %v1672, %v1739
      %v1757 = vadd.f32 %v1673, %v1742
      %v1758 = vadd.f32 %v1674, %v1745
      %v1759 = vadd.f32 %v1675, %v1748
      %v1760 = vadd.f32 %v1676, %v1751
      %v1761 = vld [vmem:[%s1677 + $0x1] sm:$0xff]
      %v1762 = vld [vmem:[%s1677 + $0x11] sm:$0xff]
      %v1763 = vld [vmem:[%s1677 + $0x21] sm:$0xff]
      %v1764 = vld [vmem:[%s1677 + $0x31] sm:$0xff]
      %v1765 = vld [vmem:[%s1677 + $0x41] sm:$0xff]
      %v1766 = vld [vmem:[%s1677 + $0x51] sm:$0xff]
      %v1767 = vld [vmem:[%s1677 + $0x61] sm:$0xff]
      %v1768 = vld [vmem:[%s1677 + $0x71] sm:$0xff]
      %s1769 = scalar_lea.vmem %s4, 56
      %v1770 = vld [vmem:[%s1769] sm:$0xff]
      %v1772 = vsel %vm1165, %v1761, 0
      %v1775 = vsel %vm1165, %v1762, 0
      %v1778 = vsel %vm1165, %v1763, 0
      %v1781 = vsel %vm1165, %v1764, 0
      %v1784 = vsel %vm1165, %v1765, 0
      %v1787 = vsel %vm1165, %v1766, 0
      %v1790 = vsel %vm1165, %v1767, 0
      %v1793 = vsel %vm1165, %v1768, 0
      %1795 = vmatpush.msra.mxu0 0.0
      %1796 = vmatpush.msra.mxu0 0.0
      %1797 = vmatpush.msra.mxu0 0.0
      %1798 = vmatpush.msra.mxu0 0.0
      %1799 = vmatpush.msra.mxu0 0.0
      %1800 = vmatpush.msra.mxu0 0.0
      %1801 = vmatpush.msra.mxu0 0.0
      %1802 = vmatpush.msra.mxu0 0.0
      %1803 = vmatpush.msra.mxu0 0.0
      %1804 = vmatpush.msra.mxu0 0.0
      %1805 = vmatpush.msra.mxu0 0.0
      %1806 = vmatpush.msra.mxu0 0.0
      %1807 = vmatpush.msra.mxu0 0.0
      %1808 = vmatpush.msra.mxu0 0.0
      %1809 = vmatpush.msra.mxu0 0.0
      %1810 = vmatpush.msra.mxu0 %v1770
      %1811 = vmatmul.f32.gmra.mxu0 %v1772
      %v1812 = vpop.f32.mrf.mxu0
      %v1813 = vadd.f32 0.0, %v1812
      %1814 = vmatmul.f32.gmra.mxu0 %v1775
      %v1815 = vpop.f32.mrf.mxu0
      %v1816 = vadd.f32 0.0, %v1815
      %1817 = vmatmul.f32.gmra.mxu0 %v1778
      %v1818 = vpop.f32.mrf.mxu0
      %v1819 = vadd.f32 0.0, %v1818
      %1820 = vmatmul.f32.gmra.mxu0 %v1781
      %v1821 = vpop.f32.mrf.mxu0
      %v1822 = vadd.f32 0.0, %v1821
      %1823 = vmatmul.f32.gmra.mxu0 %v1784
      %v1824 = vpop.f32.mrf.mxu0
      %v1825 = vadd.f32 0.0, %v1824
      %1826 = vmatmul.f32.gmra.mxu0 %v1787
      %v1827 = vpop.f32.mrf.mxu0
      %v1828 = vadd.f32 0.0, %v1827
      %1829 = vmatmul.f32.gmra.mxu0 %v1790
      %v1830 = vpop.f32.mrf.mxu0
      %v1831 = vadd.f32 0.0, %v1830
      %1832 = vmatmul.f32.gmra.mxu0 %v1793
      %v1833 = vpop.f32.mrf.mxu0
      %v1834 = vadd.f32 0.0, %v1833
      %1835 = vdwg.mxu0
      %v1836 = vadd.f32 %v1753, %v1813
      %v1837 = vadd.f32 %v1754, %v1816
      %v1838 = vadd.f32 %v1755, %v1819
      %v1839 = vadd.f32 %v1756, %v1822
      %v1840 = vadd.f32 %v1757, %v1825
      %v1841 = vadd.f32 %v1758, %v1828
      %v1842 = vadd.f32 %v1759, %v1831
      %v1843 = vadd.f32 %v1760, %v1834
      %v1844 = vld [vmem:[%s1677 + $0x2] sm:$0xff]
      %v1845 = vld [vmem:[%s1677 + $0x12] sm:$0xff]
      %v1846 = vld [vmem:[%s1677 + $0x22] sm:$0xff]
      %v1847 = vld [vmem:[%s1677 + $0x32] sm:$0xff]
      %v1848 = vld [vmem:[%s1677 + $0x42] sm:$0xff]
      %v1849 = vld [vmem:[%s1677 + $0x52] sm:$0xff]
      %v1850 = vld [vmem:[%s1677 + $0x62] sm:$0xff]
      %v1851 = vld [vmem:[%s1677 + $0x72] sm:$0xff]
      %s1852 = scalar_lea.vmem %s4, 64
      %v1853 = vld [vmem:[%s1852] sm:$0xff]
      %v1855 = vsel %vm1165, %v1844, 0
      %v1858 = vsel %vm1165, %v1845, 0
      %v1861 = vsel %vm1165, %v1846, 0
      %v1864 = vsel %vm1165, %v1847, 0
      %v1867 = vsel %vm1165, %v1848, 0
      %v1870 = vsel %vm1165, %v1849, 0
      %v1873 = vsel %vm1165, %v1850, 0
      %v1876 = vsel %vm1165, %v1851, 0
      %1878 = vmatpush.msra.mxu0 0.0
      %1879 = vmatpush.msra.mxu0 0.0
      %1880 = vmatpush.msra.mxu0 0.0
      %1881 = vmatpush.msra.mxu0 0.0
      %1882 = vmatpush.msra.mxu0 0.0
      %1883 = vmatpush.msra.mxu0 0.0
      %1884 = vmatpush.msra.mxu0 0.0
      %1885 = vmatpush.msra.mxu0 0.0
      %1886 = vmatpush.msra.mxu0 0.0
      %1887 = vmatpush.msra.mxu0 0.0
      %1888 = vmatpush.msra.mxu0 0.0
      %1889 = vmatpush.msra.mxu0 0.0
      %1890 = vmatpush.msra.mxu0 0.0
      %1891 = vmatpush.msra.mxu0 0.0
      %1892 = vmatpush.msra.mxu0 0.0
      %1893 = vmatpush.msra.mxu0 %v1853
      %1894 = vmatmul.f32.gmra.mxu0 %v1855
      %v1895 = vpop.f32.mrf.mxu0
      %v1896 = vadd.f32 0.0, %v1895
      %1897 = vmatmul.f32.gmra.mxu0 %v1858
      %v1898 = vpop.f32.mrf.mxu0
      %v1899 = vadd.f32 0.0, %v1898
      %1900 = vmatmul.f32.gmra.mxu0 %v1861
      %v1901 = vpop.f32.mrf.mxu0
      %v1902 = vadd.f32 0.0, %v1901
      %1903 = vmatmul.f32.gmra.mxu0 %v1864
      %v1904 = vpop.f32.mrf.mxu0
      %v1905 = vadd.f32 0.0, %v1904
      %1906 = vmatmul.f32.gmra.mxu0 %v1867
      %v1907 = vpop.f32.mrf.mxu0
      %v1908 = vadd.f32 0.0, %v1907
      %1909 = vmatmul.f32.gmra.mxu0 %v1870
      %v1910 = vpop.f32.mrf.mxu0
      %v1911 = vadd.f32 0.0, %v1910
      %1912 = vmatmul.f32.gmra.mxu0 %v1873
      %v1913 = vpop.f32.mrf.mxu0
      %v1914 = vadd.f32 0.0, %v1913
      %1915 = vmatmul.f32.gmra.mxu0 %v1876
      %v1916 = vpop.f32.mrf.mxu0
      %v1917 = vadd.f32 0.0, %v1916
      %1918 = vdwg.mxu0
      %v1919 = vadd.f32 %v1836, %v1896
      %v1920 = vadd.f32 %v1837, %v1899
      %v1921 = vadd.f32 %v1838, %v1902
      %v1922 = vadd.f32 %v1839, %v1905
      %v1923 = vadd.f32 %v1840, %v1908
      %v1924 = vadd.f32 %v1841, %v1911
      %v1925 = vadd.f32 %v1842, %v1914
      %v1926 = vadd.f32 %v1843, %v1917
      %v1927 = vld [vmem:[%s5] sm:$0x1]
      %v1929 = vperm.slane %v1927, 0
      %v1931 = vmul.f32 %v1919, %v1929
      %v1932 = vmul.f32 %v1920, %v1929
      %v1933 = vmul.f32 %v1921, %v1929
      %v1934 = vmul.f32 %v1922, %v1929
      %v1935 = vmul.f32 %v1923, %v1929
      %v1936 = vmul.f32 %v1924, %v1929
      %v1937 = vmul.f32 %v1925, %v1929
      %v1938 = vmul.f32 %v1926, %v1929
      %v1939 = vld [vmem:[%s6] sm:$0x1]
      %v1941 = vperm.slane %v1939, 0
      %v1943 = vadd.f32 %v1931, %v1941
      %v1944 = vadd.f32 %v1932, %v1941
      %v1945 = vadd.f32 %v1933, %v1941
      %v1946 = vadd.f32 %v1934, %v1941
      %v1947 = vadd.f32 %v1935, %v1941
      %v1948 = vadd.f32 %v1936, %v1941
      %v1949 = vadd.f32 %v1937, %v1941
      %v1950 = vadd.f32 %v1938, %v1941
      %v1951 = vmax.f32 %v1943, 0.0
      %v1952 = vmax.f32 %v1944, 0.0
      %v1953 = vmax.f32 %v1945, 0.0
      %v1954 = vmax.f32 %v1946, 0.0
      %v1955 = vmax.f32 %v1947, 0.0
      %v1956 = vmax.f32 %v1948, 0.0
      %v1957 = vmax.f32 %v1949, 0.0
      %v1958 = vmax.f32 %v1950, 0.0
      %1959 = vst.msk [vmem:[%s283] sm:$0xff] %vm1165, %v1951
      %1960 = vst.msk [vmem:[%s283 + $0x8] sm:$0xff] %vm1165, %v1952
      %1961 = vst.msk [vmem:[%s283 + $0x10] sm:$0xff] %vm1165, %v1953
      %1962 = vst.msk [vmem:[%s283 + $0x18] sm:$0xff] %vm1165, %v1954
      %1963 = vst.msk [vmem:[%s283 + $0x20] sm:$0xff] %vm1165, %v1955
      %1964 = vst.msk [vmem:[%s283 + $0x28] sm:$0xff] %vm1165, %v1956
      %1965 = vst.msk [vmem:[%s283 + $0x30] sm:$0xff] %vm1165, %v1957
      %1966 = vst.msk [vmem:[%s283 + $0x38] sm:$0xff] %vm1165, %v1958
      %p1967 = scmp.lt.s32.totalorder %s18, 1
      %s1968 = scalar_select %p1967, %s18, 1
      %s1969 = smul.addr %s1968, 8
      %s1970 = smul.addr %s1969, 8
      %s1971 = scalar_lea.vmem %s7, %s1970
      // Predicated region
      $region49: #{down_forward.1} parent=47 // pred_check
        %p1972 = pneg %p188
      $region50: #{down_forward.1} parent=47 // pred_check_branch
        %1974 = sbr.rel (%p1972) target = $region52
      $region51: #{down_forward.1} parent=47 // pred_region
        _
      $region52: #{down_forward.1} parent=47 // pred_fallthru
        _
    $region48: #{down_forward.1} parent=5 // pred_fallthru
      _
    %p1975 = scmp.le.s32.totalorder 2, %s13
    // Predicated region
    $region53: #{down_forward.1} parent=5 // pred_check
      %p1976 = pneg %p1975
    $region54: #{down_forward.1} parent=5 // pred_check_branch
      %1978 = sbr.rel (%p1976) target = $region56
    $region55: #{down_forward.1} parent=5 // pred_region
      %s1979 = ssub.s32 %s13, 2
      // Predicated region
      $region57: #{down_forward.1} parent=55 // pred_check
        %p1980 = pneg %p194
      $region58: #{down_forward.1} parent=55 // pred_check_branch
        %1982 = sbr.rel (%p1980) target = $region60
      $region59: #{down_forward.1} parent=55 // pred_region
        %p1983 = scmp.lt.s32.totalorder %s19, 1
        %s1984 = scalar_select %p1983, %s19, 1
        %s1985 = smul.addr %s1984, 8
        %s1986 = smul.addr %s1985, 8
        %s1987 = scalar_lea.vmem %s7, %s1986
      $region60: #{down_forward.1} parent=55 // pred_fallthru
        _
    $region56: #{down_forward.1} parent=5 // pred_fallthru
      _
  $region6: #{down_forward.1} parent=0 // loop_footer
    %s17 = sadd.s32 1, %s13
  $region7: #{down_forward.1} parent=0 // loop_footer_branch
    %12 = sbr.rel target = $region3
  $region8: #{down_forward.1} parent=0 // loop_exit
    _

</llo_original>
